<compile_context>
chip_gen: v7x
topology: tpu7x:2x2x1
jax: 0.10.0
libtpu: 0.0.40
codegen_flags: <defaults>
</compile_context>

<pallas_src>
import functools

import jax
import jax.numpy as jnp
from jax import lax
from jax.experimental import pallas as pl
from jax.experimental.pallas import tpu as pltpu


def rnn_featurizer_kernel(emb_ref, wih0_ref, whh0_ref, b0_ref,
                          wihf_ref, whhf_ref, bf_ref, seqlen_ref, out_ref,
                          x0_scr, h_scr, c_scr, last_scr, max_scr, min_scr,
                          sum_scr, *, time_unroll):
    """One grid step processes a tile of Tt timesteps.

    emb_ref:    (Tt*B, ninp) bf16  embedded tokens for this time tile (flattened T,B)
    wih0_ref:   (ninp, 4H)   bf16  layer-0 input weights   (gate order i,f,g,o; g cols pre-scaled x2)
    whh0_ref:   (H, 4H)      bf16  layer-0 recurrent weights
    b0_ref:     (1, 4H)      f32   layer-0 bias
    wihf_ref:   (L-1, H, 4H) bf16  input weights, layers 1..L-1
    whhf_ref:   (L-1, H, 4H) bf16  recurrent weights, layers 1..L-1
    bf_ref:     (L-1, 1, 4H) f32   bias, layers 1..L-1
    seqlen_ref: (B, 1)       i32   valid sequence length per example
    out_ref:    (B, 4H)      f32   [last_cell | max | min | mean]
    scratch: x0_scr (Tt*B,4H) f32; h_scr/c_scr (L,B,H) f32; last/max/min/sum (B,H) f32
    """
    TtB = emb_ref.shape[0]
    L, B, H = h_scr.shape
    Tt = TtB // B
    t_base = pl.program_id(0) * Tt

    @pl.when(pl.program_id(0) == 0)
    def _init():                                    # rnn.reset_hidden(batch)
        h_scr[...] = jnp.zeros_like(h_scr)
        c_scr[...] = jnp.zeros_like(c_scr)
        last_scr[...] = jnp.zeros_like(last_scr)
        max_scr[...] = jnp.full_like(max_scr, -jnp.inf)
        min_scr[...] = jnp.full_like(min_scr, jnp.inf)
        sum_scr[...] = jnp.zeros_like(sum_scr)

    # Hoisted layer-0 input projection: one wide bf16 MXU matmul for the whole tile.
    x0_scr[...] = (jnp.dot(emb_ref[...], wih0_ref[...],
                           preferred_element_type=jnp.float32) + b0_ref[...])

    # Hoist weight / bias / seq-len reads out of the recurrent loop.
    whh0 = whh0_ref[...]
    wihf = [wihf_ref[l] for l in range(L - 1)]
    whhf = [whhf_ref[l] for l in range(L - 1)]
    bf = [bf_ref[l] for l in range(L - 1)]
    seqlen = seqlen_ref[...]

    def lstm_cell(gates, c_prev):
        # g-gate pre-activations were scaled x2 in the wrapper, so a SINGLE
        # full-vreg sigmoid over all 4H lanes also yields tanh(g) = 2*sigmoid(2g)-1.
        s = jax.nn.sigmoid(gates)                    # one EUP pass (B, 4H)
        i_g = s[:, :H]
        f_g = s[:, H:2 * H]
        g_g = 2.0 * s[:, 2 * H:3 * H] - 1.0          # VPU only
        o_g = s[:, 3 * H:]
        c_new = f_g * c_prev + i_g * g_g
        h_new = o_g * jnp.tanh(c_new)
        return h_new, c_new

    def step(lt, carry):
        hs, cs, f_last, f_max, f_min, f_sum = carry
        # Layer 0: only the recurrent matmul remains on the critical path.
        x0_t = x0_scr[pl.ds(pl.multiple_of(lt * B, B), B), :]
        g0 = x0_t + jnp.dot(hs[0].astype(jnp.bfloat16), whh0,
                            preferred_element_type=jnp.float32)
        h_l, c_l = lstm_cell(g0, cs[0])
        new_h, new_c = [h_l], [c_l]
        x = h_l
        for l in range(1, L):                        # static unroll over layers
            # Two independent MXU dots (no per-step lane-axis concat).
            gl = (jnp.dot(x.astype(jnp.bfloat16), wihf[l - 1],
                          preferred_element_type=jnp.float32)
                  + jnp.dot(hs[l].astype(jnp.bfloat16), whhf[l - 1],
                            preferred_element_type=jnp.float32)
                  + bf[l - 1])
            h_l, c_l = lstm_cell(gl, cs[l])
            new_h.append(h_l)
            new_c.append(c_l)
            x = h_l                                  # inter-layer dropout = identity (eval)

        cell = new_c[-1]                             # get_features: last-layer cell
        valid = (t_base + lt) < seqlen               # (B,1) get_valid_outs mask
        f_last = jnp.where(valid, cell, f_last)
        f_max = jnp.where(valid, jnp.maximum(f_max, cell), f_max)
        f_min = jnp.where(valid, jnp.minimum(f_min, cell), f_min)
        f_sum = jnp.where(valid, f_sum + cell, f_sum)
        return (tuple(new_h), tuple(new_c), f_last, f_max, f_min, f_sum)

    carry0 = (tuple(h_scr[l] for l in range(L)),
              tuple(c_scr[l] for l in range(L)),
              last_scr[...], max_scr[...], min_scr[...], sum_scr[...])
    hs, cs, f_last, f_max, f_min, f_sum = lax.fori_loop(
        0, Tt, step, carry0, unroll=time_unroll)

    # Persist carries across time tiles.  NOTE: padded timesteps (t >= T) still run
    # the LSTM on zero embeddings, so the final h/c state is only valid for the
    # feature path (features are masked) — fine while get_hidden is unsupported.
    for l in range(L):
        h_scr[l] = hs[l]
        c_scr[l] = cs[l]
    last_scr[...] = f_last
    max_scr[...] = f_max
    min_scr[...] = f_min
    sum_scr[...] = f_sum

    @pl.when(pl.program_id(0) == pl.num_programs(0) - 1)
    def _finalize():
        f_mean = sum_scr[...] / seqlen_ref[...].astype(jnp.float32)
        out_ref[...] = jnp.concatenate(
            [last_scr[...], max_scr[...], min_scr[...], f_mean], axis=-1)


def rnn_featurizer(tokens, seq_len, emb_table, w_ih, w_hh, bias, time_tile=None,
                   vmem_budget_bytes=32 * 1024 * 1024):
    """Forward pass of RNNFeaturizer (seq_len path). Returns (cell, None)."""
    T, B = tokens.shape
    L, H, fourH = w_hh.shape
    ninp = w_ih.shape[1]
    assert fourH == 4 * H
    if L > 1:
        assert ninp == H, "stacked weight tensor requires ninp == nhid for layers >= 1"

    # Pre-scale the g-gate columns (PyTorch order i,f,g,o -> cols [2H:3H)) by 2 so the
    # kernel can compute tanh(g) from the same full-width sigmoid (tanh(x)=2*sig(2x)-1).
    def scale_g(w):
        return jnp.concatenate(
            [w[..., :2 * H], 2.0 * w[..., 2 * H:3 * H], w[..., 3 * H:]], axis=-1)

    w_ih_s = scale_g(w_ih.astype(jnp.float32))
    w_hh_s = scale_g(w_hh.astype(jnp.float32))
    b_s = scale_g(bias.astype(jnp.float32))

    # bf16 MXU operands (weights); biases / state / accumulators stay f32.
    wih0 = w_ih_s[0].astype(jnp.bfloat16)                     # (ninp, 4H)
    whh0 = w_hh_s[0].astype(jnp.bfloat16)                     # (H, 4H)
    b0 = b_s[0]                                               # (1, 4H) f32
    if L > 1:
        wihf = w_ih_s[1:].astype(jnp.bfloat16)                # (L-1, H, 4H)
        whhf = w_hh_s[1:].astype(jnp.bfloat16)                # (L-1, H, 4H)
        bf = b_s[1:]                                          # (L-1, 1, 4H) f32
    else:
        wihf = jnp.zeros((1, H, 4 * H), jnp.bfloat16)         # unused placeholders
        whhf = jnp.zeros((1, H, 4 * H), jnp.bfloat16)
        bf = jnp.zeros((1, 1, 4 * H), jnp.float32)
    nwf = wihf.shape[0]

    # Glue: nn.Embedding lookup; nn.Dropout is identity in eval mode.  bf16 halves
    # the emb DMA bytes; the f32 accumulation happens in the hoisted projection.
    # TODO(synk): at production ntoken, stream tokens via scalar prefetch and gather
    #             embedding rows in-kernel instead of materializing emb in HBM.
    emb = emb_table[tokens].astype(jnp.bfloat16)              # (T, B, ninp)
    seqlen2d = seq_len.reshape(B, 1).astype(jnp.int32)

    # VMEM-budget-aware time tile (v7x has only 64 MiB physical VMEM).
    if time_tile is None:
        fixed = (2 * L + 4) * B * H * 4                       # h/c carries + pools (f32)
        fixed += (ninp + (2 * L - 1) * H) * 4 * H * 2         # resident bf16 weights
        per_t = 2 * B * ninp * 2 + B * 4 * H * 4              # emb (double-buffered) + x0 row
        time_tile = max(1, min(T, (vmem_budget_bytes - fixed) // per_t, 512))
    Tt = int(time_tile)
    T_pad = ((T + Tt - 1) // Tt) * Tt
    if T_pad != T:
        emb = jnp.pad(emb, ((0, T_pad - T), (0, 0), (0, 0)))  # padded steps invalid
    emb2d = emb.reshape(T_pad * B, ninp)                      # row-major: Tt*B rows/tile
    grid = (T_pad // Tt,)
    unroll = Tt if Tt <= 16 else 8                            # deeper unroll for LLO overlap

    kernel = functools.partial(rnn_featurizer_kernel, time_unroll=unroll)
    cell = pl.pallas_call(
        kernel,
        out_shape=jax.ShapeDtypeStruct((B, 4 * H), jnp.float32),
        grid_spec=pltpu.PrefetchScalarGridSpec(
            num_scalar_prefetch=0,
            grid=grid,
            in_specs=[
                pl.BlockSpec((Tt * B, ninp), lambda i: (i, 0)),          # emb (streamed)
                pl.BlockSpec((ninp, 4 * H), lambda i: (0, 0)),           # wih0 (resident)
                pl.BlockSpec((H, 4 * H), lambda i: (0, 0)),              # whh0
                pl.BlockSpec((1, 4 * H), lambda i: (0, 0)),              # b0
                pl.BlockSpec((nwf, H, 4 * H), lambda i: (0, 0, 0)),      # W_ih, layers>=1
                pl.BlockSpec((nwf, H, 4 * H), lambda i: (0, 0, 0)),      # W_hh, layers>=1
                pl.BlockSpec((nwf, 1, 4 * H), lambda i: (0, 0, 0)),      # bias, layers>=1
                pl.BlockSpec((B, 1), lambda i: (0, 0)),                  # seq_len
            ],
            out_specs=pl.BlockSpec((B, 4 * H), lambda i: (0, 0)),
            scratch_shapes=[
                pltpu.VMEM((Tt * B, 4 * H), jnp.float32),   # hoisted layer-0 projection
                pltpu.VMEM((L, B, H), jnp.float32),         # h carry
                pltpu.VMEM((L, B, H), jnp.float32),         # c carry
                pltpu.VMEM((B, H), jnp.float32),            # last
                pltpu.VMEM((B, H), jnp.float32),            # max
                pltpu.VMEM((B, H), jnp.float32),            # min
                pltpu.VMEM((B, H), jnp.float32),            # sum
            ]),
        compiler_params=pltpu.CompilerParams(
            dimension_semantics=("arbitrary",),            # recurrence => sequential T axis
            vmem_limit_bytes=64 * 1024 * 1024),
    )(emb2d, wih0, whh0, b0, wihf, whhf, bf, seqlen2d)
    return cell, None                                        # aux_lm_loss=False


def reference(tokens, seq_len, emb_table, w_ih, w_hh, bias):
    """Pure-JAX f32 reference mirroring the PyTorch forward (seq_len path)."""
    T, B = tokens.shape
    L, H, _ = w_hh.shape
    emb = emb_table[tokens].astype(jnp.float32)
    seq2 = seq_len.reshape(B, 1)
    h = jnp.zeros((L, B, H), jnp.float32)
    c = jnp.zeros((L, B, H), jnp.float32)
    f_last = jnp.zeros((B, H), jnp.float32)
    f_max = jnp.full((B, H), -jnp.inf, jnp.float32)
    f_min = jnp.full((B, H), jnp.inf, jnp.float32)
    f_sum = jnp.zeros((B, H), jnp.float32)
    for t in range(T):
        x = emb[t]
        nh, nc = [], []
        for l in range(L):
            g = x @ w_ih[l] + h[l] @ w_hh[l] + bias[l]
            i_g = jax.nn.sigmoid(g[:, :H])
            f_g = jax.nn.sigmoid(g[:, H:2 * H])
            g_g = jnp.tanh(g[:, 2 * H:3 * H])
            o_g = jax.nn.sigmoid(g[:, 3 * H:])
            c_l = f_g * c[l] + i_g * g_g
            h_l = o_g * jnp.tanh(c_l)
            nh.append(h_l)
            nc.append(c_l)
            x = h_l
        h = jnp.stack(nh)
        c = jnp.stack(nc)
        cell = nc[-1]
        valid = t < seq2
        f_last = jnp.where(valid, cell, f_last)
        f_max = jnp.where(valid, jnp.maximum(f_max, cell), f_max)
        f_min = jnp.where(valid, jnp.minimum(f_min, cell), f_min)
        f_sum = jnp.where(valid, f_sum + cell, f_sum)
    f_mean = f_sum / seq2.astype(jnp.float32)
    return jnp.concatenate([f_last, f_max, f_min, f_mean], axis=-1)


if __name__ == "__main__":
    # Small, deterministic configuration.
    T, B = 8, 8            # seq length, batch
    ntoken = 64
    ninp = 32              # == nhid so stacked-layer weights share one stacked tensor
    nhid = 32
    nlayers = 2

    key = jax.random.PRNGKey(0)
    k_tok, k_len, k_emb, k_wih, k_whh, k_b = jax.random.split(key, 6)

    tokens = jax.random.randint(k_tok, (T, B), 0, ntoken, dtype=jnp.int32)
    seq_len = jax.random.randint(k_len, (B,), 1, T + 1, dtype=jnp.int32)  # in [1, T]

    emb_table = 0.1 * jax.random.normal(k_emb, (ntoken, ninp), jnp.float32)
    w_ih = 0.1 * jax.random.normal(k_wih, (nlayers, ninp, 4 * nhid), jnp.float32)
    w_hh = 0.1 * jax.random.normal(k_whh, (nlayers, nhid, 4 * nhid), jnp.float32)
    bias = 0.1 * jax.random.normal(k_b, (nlayers, 1, 4 * nhid), jnp.float32)

    # time_tile=4 -> grid of 2 time tiles, exercising the cross-tile scratch carry.
    cell, lm_out = rnn_featurizer(tokens, seq_len, emb_table, w_ih, w_hh, bias,
                                  time_tile=4)
    cell = jax.block_until_ready(cell)

    ref = reference(tokens, seq_len, emb_table, w_ih, w_hh, bias)
    assert cell.shape == (B, 4 * nhid), cell.shape
    assert lm_out is None
    max_err = float(jnp.max(jnp.abs(cell - ref)))
    # bf16 MXU operands (f32 accumulation / f32 recurrent state): relaxed tolerance.
    assert jnp.allclose(cell, ref, rtol=2e-2, atol=5e-3), max_err

    print("KERNEL_OK")
</pallas_src>

<mosaic_0001>
module attributes {stable_mosaic.version = 11 : i64} {
  func.func @rnn_featurizer_kernel(%arg0: i32, %arg1: memref<32x32xbf16, #tpu.memory_space<vmem>>, %arg2: memref<32x128xbf16, #tpu.memory_space<vmem>>, %arg3: memref<32x128xbf16, #tpu.memory_space<vmem>>, %arg4: memref<1x128xf32, #tpu.memory_space<vmem>>, %arg5: memref<1x32x128xbf16, #tpu.memory_space<vmem>>, %arg6: memref<1x32x128xbf16, #tpu.memory_space<vmem>>, %arg7: memref<1x1x128xf32, #tpu.memory_space<vmem>>, %arg8: memref<8x1xi32, #tpu.memory_space<vmem>>, %arg9: memref<8x128xf32, #tpu.memory_space<vmem>>, %arg10: memref<32x128xf32, #tpu.memory_space<vmem>>, %arg11: memref<2x8x32xf32, #tpu.memory_space<vmem>>, %arg12: memref<2x8x32xf32, #tpu.memory_space<vmem>>, %arg13: memref<8x32xf32, #tpu.memory_space<vmem>>, %arg14: memref<8x32xf32, #tpu.memory_space<vmem>>, %arg15: memref<8x32xf32, #tpu.memory_space<vmem>>, %arg16: memref<8x32xf32, #tpu.memory_space<vmem>>) attributes {dimension_semantics = [#tpu.dimension_semantics<arbitrary>], iteration_bounds = array<i64: 2>, scalar_prefetch = 0 : i64, scratch_operands = 7 : i64, tpu.core_type = #tpu.core_type<tc>, window_params = [{transform_indices = @transform_0, window_bounds = array<i64: 32, 32>}, {pipeline_mode = #tpu.pipeline_mode<synchronous>, transform_indices = @transform_1, window_bounds = array<i64: 32, 128>}, {pipeline_mode = #tpu.pipeline_mode<synchronous>, transform_indices = @transform_2, window_bounds = array<i64: 32, 128>}, {pipeline_mode = #tpu.pipeline_mode<synchronous>, transform_indices = @transform_3, window_bounds = array<i64: 1, 128>}, {pipeline_mode = #tpu.pipeline_mode<synchronous>, transform_indices = @transform_4, window_bounds = array<i64: 1, 32, 128>}, {pipeline_mode = #tpu.pipeline_mode<synchronous>, transform_indices = @transform_5, window_bounds = array<i64: 1, 32, 128>}, {pipeline_mode = #tpu.pipeline_mode<synchronous>, transform_indices = @transform_6, window_bounds = array<i64: 1, 1, 128>}, {pipeline_mode = #tpu.pipeline_mode<synchronous>, transform_indices = @transform_7, window_bounds = array<i64: 8, 1>}, {pipeline_mode = #tpu.pipeline_mode<synchronous>, transform_indices = @transform_8, window_bounds = array<i64: 8, 128>}]} {
    %c4_i32 = arith.constant 4 : i32
    %0 = arith.muli %arg0, %c4_i32 : i32
    %c0_i32 = arith.constant 0 : i32
    %1 = arith.cmpi eq, %arg0, %c0_i32 : i32
    %2 = arith.extui %1 : i1 to i32
    %c0_i32_0 = arith.constant 0 : i32
    %3 = arith.cmpi ne, %2, %c0_i32_0 : i32
    scf.if %3 {
      %cst_107 = arith.constant 0.000000e+00 : f32
      %322 = vector.broadcast %cst_107 : f32 to vector<2x8x32xf32>
      %c0_108 = arith.constant 0 : index
      %c0_109 = arith.constant 0 : index
      %c0_110 = arith.constant 0 : index
      %323 = vector.load %arg11[%c0_108, %c0_109, %c0_110] : memref<2x8x32xf32, #tpu.memory_space<vmem>>, vector<2x8x32xf32>
      tpu.vector_store %arg11[%c0_108, %c0_109, %c0_110], %322 {strides = array<i32>} : memref<2x8x32xf32, #tpu.memory_space<vmem>>, vector<2x8x32xf32>,
      %cst_111 = arith.constant 0.000000e+00 : f32
      %324 = vector.broadcast %cst_111 : f32 to vector<2x8x32xf32>
      %c0_112 = arith.constant 0 : index
      %c0_113 = arith.constant 0 : index
      %c0_114 = arith.constant 0 : index
      %325 = vector.load %arg12[%c0_112, %c0_113, %c0_114] : memref<2x8x32xf32, #tpu.memory_space<vmem>>, vector<2x8x32xf32>
      tpu.vector_store %arg12[%c0_112, %c0_113, %c0_114], %324 {strides = array<i32>} : memref<2x8x32xf32, #tpu.memory_space<vmem>>, vector<2x8x32xf32>,
      %cst_115 = arith.constant 0.000000e+00 : f32
      %326 = vector.broadcast %cst_115 : f32 to vector<8x32xf32>
      %c0_116 = arith.constant 0 : index
      %c0_117 = arith.constant 0 : index
      %327 = vector.load %arg13[%c0_116, %c0_117] : memref<8x32xf32, #tpu.memory_space<vmem>>, vector<8x32xf32>
      tpu.vector_store %arg13[%c0_116, %c0_117], %326 {strides = array<i32>} : memref<8x32xf32, #tpu.memory_space<vmem>>, vector<8x32xf32>,
      %cst_118 = arith.constant 0xFF800000 : f32
      %328 = vector.broadcast %cst_118 : f32 to vector<8x32xf32>
      %c0_119 = arith.constant 0 : index
      %c0_120 = arith.constant 0 : index
      %329 = vector.load %arg14[%c0_119, %c0_120] : memref<8x32xf32, #tpu.memory_space<vmem>>, vector<8x32xf32>
      tpu.vector_store %arg14[%c0_119, %c0_120], %328 {strides = array<i32>} : memref<8x32xf32, #tpu.memory_space<vmem>>, vector<8x32xf32>,
      %cst_121 = arith.constant 0x7F800000 : f32
      %330 = vector.broadcast %cst_121 : f32 to vector<8x32xf32>
      %c0_122 = arith.constant 0 : index
      %c0_123 = arith.constant 0 : index
      %331 = vector.load %arg15[%c0_122, %c0_123] : memref<8x32xf32, #tpu.memory_space<vmem>>, vector<8x32xf32>
      tpu.vector_store %arg15[%c0_122, %c0_123], %330 {strides = array<i32>} : memref<8x32xf32, #tpu.memory_space<vmem>>, vector<8x32xf32>,
      %cst_124 = arith.constant 0.000000e+00 : f32
      %332 = vector.broadcast %cst_124 : f32 to vector<8x32xf32>
      %c0_125 = arith.constant 0 : index
      %c0_126 = arith.constant 0 : index
      %333 = vector.load %arg16[%c0_125, %c0_126] : memref<8x32xf32, #tpu.memory_space<vmem>>, vector<8x32xf32>
      tpu.vector_store %arg16[%c0_125, %c0_126], %332 {strides = array<i32>} : memref<8x32xf32, #tpu.memory_space<vmem>>, vector<8x32xf32>,
    } else {
    }
    %c0 = arith.constant 0 : index
    %c0_1 = arith.constant 0 : index
    %4 = vector.load %arg1[%c0, %c0_1] : memref<32x32xbf16, #tpu.memory_space<vmem>>, vector<32x32xbf16>
    %c0_2 = arith.constant 0 : index
    %c0_3 = arith.constant 0 : index
    %5 = vector.load %arg2[%c0_2, %c0_3] : memref<32x128xbf16, #tpu.memory_space<vmem>>, vector<32x128xbf16>
    %cst = arith.constant dense<0.000000e+00> : vector<32x128xf32>
    %6 = tpu.matmul %4, %5, %cst {dimension_numbers = #tpu.dot_dimension_numbers<[1], [0], [0], [1], [0, 0, 1, 1], [], []>} : vector<32x32xbf16>, vector<32x128xbf16>, vector<32x128xf32> -> vector<32x128xf32>
    %c0_4 = arith.constant 0 : index
    %c0_5 = arith.constant 0 : index
    %7 = vector.load %arg4[%c0_4, %c0_5] : memref<1x128xf32, #tpu.memory_space<vmem>>, vector<1x128xf32>
    %8 = vector.broadcast %7 : vector<1x128xf32> to vector<32x128xf32>
    %9 = arith.addf %6, %8 : vector<32x128xf32>
    %c0_6 = arith.constant 0 : index
    %c0_7 = arith.constant 0 : index
    %10 = vector.load %arg10[%c0_6, %c0_7] : memref<32x128xf32, #tpu.memory_space<vmem>>, vector<32x128xf32>
    tpu.vector_store %arg10[%c0_6, %c0_7], %9 {strides = array<i32>} : memref<32x128xf32, #tpu.memory_space<vmem>>, vector<32x128xf32>,
    %c0_8 = arith.constant 0 : index
    %c0_9 = arith.constant 0 : index
    %11 = vector.load %arg3[%c0_8, %c0_9] : memref<32x128xbf16, #tpu.memory_space<vmem>>, vector<32x128xbf16>
    %c0_10 = arith.constant 0 : index
    %c0_11 = arith.constant 0 : index
    %c0_12 = arith.constant 0 : index
    %12 = vector.load %arg5[%c0_10, %c0_11, %c0_12] : memref<1x32x128xbf16, #tpu.memory_space<vmem>>, vector<1x32x128xbf16>
    %13 = vector.shape_cast %12 : vector<1x32x128xbf16> to vector<32x128xbf16>
    %c0_13 = arith.constant 0 : index
    %c0_14 = arith.constant 0 : index
    %c0_15 = arith.constant 0 : index
    %14 = vector.load %arg6[%c0_13, %c0_14, %c0_15] : memref<1x32x128xbf16, #tpu.memory_space<vmem>>, vector<1x32x128xbf16>
    %15 = vector.shape_cast %14 : vector<1x32x128xbf16> to vector<32x128xbf16>
    %c0_16 = arith.constant 0 : index
    %c0_17 = arith.constant 0 : index
    %c0_18 = arith.constant 0 : index
    %16 = vector.load %arg7[%c0_16, %c0_17, %c0_18] : memref<1x1x128xf32, #tpu.memory_space<vmem>>, vector<1x1x128xf32>
    %17 = vector.shape_cast %16 : vector<1x1x128xf32> to vector<1x128xf32>
    %c0_19 = arith.constant 0 : index
    %c0_20 = arith.constant 0 : index
    %18 = vector.load %arg8[%c0_19, %c0_20] : memref<8x1xi32, #tpu.memory_space<vmem>>, vector<8x1xi32>
    %c0_21 = arith.constant 0 : index
    %c0_22 = arith.constant 0 : index
    %c0_23 = arith.constant 0 : index
    %19 = vector.load %arg11[%c0_21, %c0_22, %c0_23] : memref<2x8x32xf32, #tpu.memory_space<vmem>>, vector<1x8x32xf32>
    %20 = vector.shape_cast %19 : vector<1x8x32xf32> to vector<8x32xf32>
    %c1 = arith.constant 1 : index
    %c0_24 = arith.constant 0 : index
    %c0_25 = arith.constant 0 : index
    %21 = vector.load %arg11[%c1, %c0_24, %c0_25] : memref<2x8x32xf32, #tpu.memory_space<vmem>>, vector<1x8x32xf32>
    %22 = vector.shape_cast %21 : vector<1x8x32xf32> to vector<8x32xf32>
    %c0_26 = arith.constant 0 : index
    %c0_27 = arith.constant 0 : index
    %c0_28 = arith.constant 0 : index
    %23 = vector.load %arg12[%c0_26, %c0_27, %c0_28] : memref<2x8x32xf32, #tpu.memory_space<vmem>>, vector<1x8x32xf32>
    %24 = vector.shape_cast %23 : vector<1x8x32xf32> to vector<8x32xf32>
    %c1_29 = arith.constant 1 : index
    %c0_30 = arith.constant 0 : index
    %c0_31 = arith.constant 0 : index
    %25 = vector.load %arg12[%c1_29, %c0_30, %c0_31] : memref<2x8x32xf32, #tpu.memory_space<vmem>>, vector<1x8x32xf32>
    %26 = vector.shape_cast %25 : vector<1x8x32xf32> to vector<8x32xf32>
    %c0_32 = arith.constant 0 : index
    %c0_33 = arith.constant 0 : index
    %27 = vector.load %arg13[%c0_32, %c0_33] : memref<8x32xf32, #tpu.memory_space<vmem>>, vector<8x32xf32>
    %c0_34 = arith.constant 0 : index
    %c0_35 = arith.constant 0 : index
    %28 = vector.load %arg14[%c0_34, %c0_35] : memref<8x32xf32, #tpu.memory_space<vmem>>, vector<8x32xf32>
    %c0_36 = arith.constant 0 : index
    %c0_37 = arith.constant 0 : index
    %29 = vector.load %arg15[%c0_36, %c0_37] : memref<8x32xf32, #tpu.memory_space<vmem>>, vector<8x32xf32>
    %c0_38 = arith.constant 0 : index
    %c0_39 = arith.constant 0 : index
    %30 = vector.load %arg16[%c0_38, %c0_39] : memref<8x32xf32, #tpu.memory_space<vmem>>, vector<8x32xf32>
    %c0_i32_40 = arith.constant 0 : i32
    %c8_i32 = arith.constant 8 : i32
    %31 = arith.muli %c0_i32_40, %c8_i32 : i32
    %32 = tpu.assume_multiple %31, 8 : i32
    %33 = arith.index_cast %32 : i32 to index
    %c0_41 = arith.constant 0 : index
    %34 = vector.load %arg10[%33, %c0_41] : memref<32x128xf32, #tpu.memory_space<vmem>>, vector<8x128xf32>
    %35 = arith.truncf %20 : vector<8x32xf32> to vector<8x32xbf16>
    %cst_42 = arith.constant dense<0.000000e+00> : vector<8x128xf32>
    %36 = tpu.matmul %35, %11, %cst_42 {dimension_numbers = #tpu.dot_dimension_numbers<[1], [0], [0], [1], [0, 0, 1, 1], [], []>} : vector<8x32xbf16>, vector<32x128xbf16>, vector<8x128xf32> -> vector<8x128xf32>
    %37 = arith.addf %34, %36 : vector<8x128xf32>
    %38 = arith.negf %37 : vector<8x128xf32>
    %39 = math.exp %38 : vector<8x128xf32>
    %cst_43 = arith.constant 1.000000e+00 : f32
    %40 = vector.broadcast %cst_43 : f32 to vector<8x128xf32>
    %41 = arith.addf %40, %39 : vector<8x128xf32>
    %42 = arith.divf %40, %41 : vector<8x128xf32>
    %43 = vector.extract_strided_slice %42 {offsets = [0, 0], sizes = [8, 32], strides = [1, 1]} : vector<8x128xf32> to vector<8x32xf32>
    %44 = vector.extract_strided_slice %42 {offsets = [0, 32], sizes = [8, 32], strides = [1, 1]} : vector<8x128xf32> to vector<8x32xf32>
    %45 = vector.extract_strided_slice %42 {offsets = [0, 64], sizes = [8, 32], strides = [1, 1]} : vector<8x128xf32> to vector<8x32xf32>
    %cst_44 = arith.constant 2.000000e+00 : f32
    %46 = vector.broadcast %cst_44 : f32 to vector<8x32xf32>
    %47 = arith.mulf %46, %45 : vector<8x32xf32>
    %cst_45 = arith.constant 1.000000e+00 : f32
    %48 = vector.broadcast %cst_45 : f32 to vector<8x32xf32>
    %49 = arith.subf %47, %48 : vector<8x32xf32>
    %50 = vector.extract_strided_slice %42 {offsets = [0, 96], sizes = [8, 32], strides = [1, 1]} : vector<8x128xf32> to vector<8x32xf32>
    %51 = arith.mulf %44, %24 : vector<8x32xf32>
    %52 = arith.mulf %43, %49 : vector<8x32xf32>
    %53 = arith.addf %51, %52 : vector<8x32xf32>
    %54 = math.tanh %53 : vector<8x32xf32>
    %55 = arith.mulf %50, %54 : vector<8x32xf32>
    %56 = arith.truncf %55 : vector<8x32xf32> to vector<8x32xbf16>
    %cst_46 = arith.constant dense<0.000000e+00> : vector<8x128xf32>
    %57 = tpu.matmul %56, %13, %cst_46 {dimension_numbers = #tpu.dot_dimension_numbers<[1], [0], [0], [1], [0, 0, 1, 1], [], []>} : vector<8x32xbf16>, vector<32x128xbf16>, vector<8x128xf32> -> vector<8x128xf32>
    %58 = arith.truncf %22 : vector<8x32xf32> to vector<8x32xbf16>
    %cst_47 = arith.constant dense<0.000000e+00> : vector<8x128xf32>
    %59 = tpu.matmul %58, %15, %cst_47 {dimension_numbers = #tpu.dot_dimension_numbers<[1], [0], [0], [1], [0, 0, 1, 1], [], []>} : vector<8x32xbf16>, vector<32x128xbf16>, vector<8x128xf32> -> vector<8x128xf32>
    %60 = arith.addf %57, %59 : vector<8x128xf32>
    %61 = vector.broadcast %17 : vector<1x128xf32> to vector<8x128xf32>
    %62 = arith.addf %60, %61 : vector<8x128xf32>
    %63 = arith.negf %62 : vector<8x128xf32>
    %64 = math.exp %63 : vector<8x128xf32>
    %cst_48 = arith.constant 1.000000e+00 : f32
    %65 = vector.broadcast %cst_48 : f32 to vector<8x128xf32>
    %66 = arith.addf %65, %64 : vector<8x128xf32>
    %67 = arith.divf %65, %66 : vector<8x128xf32>
    %68 = vector.extract_strided_slice %67 {offsets = [0, 0], sizes = [8, 32], strides = [1, 1]} : vector<8x128xf32> to vector<8x32xf32>
    %69 = vector.extract_strided_slice %67 {offsets = [0, 32], sizes = [8, 32], strides = [1, 1]} : vector<8x128xf32> to vector<8x32xf32>
    %70 = vector.extract_strided_slice %67 {offsets = [0, 64], sizes = [8, 32], strides = [1, 1]} : vector<8x128xf32> to vector<8x32xf32>
    %cst_49 = arith.constant 2.000000e+00 : f32
    %71 = vector.broadcast %cst_49 : f32 to vector<8x32xf32>
    %72 = arith.mulf %71, %70 : vector<8x32xf32>
    %cst_50 = arith.constant 1.000000e+00 : f32
    %73 = vector.broadcast %cst_50 : f32 to vector<8x32xf32>
    %74 = arith.subf %72, %73 : vector<8x32xf32>
    %75 = vector.extract_strided_slice %67 {offsets = [0, 96], sizes = [8, 32], strides = [1, 1]} : vector<8x128xf32> to vector<8x32xf32>
    %76 = arith.mulf %69, %26 : vector<8x32xf32>
    %77 = arith.mulf %68, %74 : vector<8x32xf32>
    %78 = arith.addf %76, %77 : vector<8x32xf32>
    %79 = math.tanh %78 : vector<8x32xf32>
    %80 = arith.mulf %75, %79 : vector<8x32xf32>
    %81 = arith.addi %0, %c0_i32_40 : i32
    %82 = vector.broadcast %81 : i32 to vector<8x1xi32>
    %83 = arith.cmpi slt, %82, %18 : vector<8x1xi32>
    %84 = vector.shape_cast %83 : vector<8x1xi1> to vector<8x1xi1>
    %85 = vector.broadcast %84 : vector<8x1xi1> to vector<8x32xi1>
    %86 = arith.select %85, %78, %27 : vector<8x32xi1>, vector<8x32xf32>
    %87 = arith.maximumf %28, %78 : vector<8x32xf32>
    %88 = vector.shape_cast %83 : vector<8x1xi1> to vector<8x1xi1>
    %89 = vector.broadcast %88 : vector<8x1xi1> to vector<8x32xi1>
    %90 = arith.select %89, %87, %28 : vector<8x32xi1>, vector<8x32xf32>
    %91 = arith.minimumf %29, %78 : vector<8x32xf32>
    %92 = vector.shape_cast %83 : vector<8x1xi1> to vector<8x1xi1>
    %93 = vector.broadcast %92 : vector<8x1xi1> to vector<8x32xi1>
    %94 = arith.select %93, %91, %29 : vector<8x32xi1>, vector<8x32xf32>
    %95 = arith.addf %30, %78 : vector<8x32xf32>
    %96 = vector.shape_cast %83 : vector<8x1xi1> to vector<8x1xi1>
    %97 = vector.broadcast %96 : vector<8x1xi1> to vector<8x32xi1>
    %98 = arith.select %97, %95, %30 : vector<8x32xi1>, vector<8x32xf32>
    %c1_i32 = arith.constant 1 : i32
    %c8_i32_51 = arith.constant 8 : i32
    %99 = arith.muli %c1_i32, %c8_i32_51 : i32
    %100 = tpu.assume_multiple %99, 8 : i32
    %101 = arith.index_cast %100 : i32 to index
    %c0_52 = arith.constant 0 : index
    %102 = vector.load %arg10[%101, %c0_52] : memref<32x128xf32, #tpu.memory_space<vmem>>, vector<8x128xf32>
    %103 = arith.truncf %55 : vector<8x32xf32> to vector<8x32xbf16>
    %cst_53 = arith.constant dense<0.000000e+00> : vector<8x128xf32>
    %104 = tpu.matmul %103, %11, %cst_53 {dimension_numbers = #tpu.dot_dimension_numbers<[1], [0], [0], [1], [0, 0, 1, 1], [], []>} : vector<8x32xbf16>, vector<32x128xbf16>, vector<8x128xf32> -> vector<8x128xf32>
    %105 = arith.addf %102, %104 : vector<8x128xf32>
    %106 = arith.negf %105 : vector<8x128xf32>
    %107 = math.exp %106 : vector<8x128xf32>
    %cst_54 = arith.constant 1.000000e+00 : f32
    %108 = vector.broadcast %cst_54 : f32 to vector<8x128xf32>
    %109 = arith.addf %108, %107 : vector<8x128xf32>
    %110 = arith.divf %108, %109 : vector<8x128xf32>
    %111 = vector.extract_strided_slice %110 {offsets = [0, 0], sizes = [8, 32], strides = [1, 1]} : vector<8x128xf32> to vector<8x32xf32>
    %112 = vector.extract_strided_slice %110 {offsets = [0, 32], sizes = [8, 32], strides = [1, 1]} : vector<8x128xf32> to vector<8x32xf32>
    %113 = vector.extract_strided_slice %110 {offsets = [0, 64], sizes = [8, 32], strides = [1, 1]} : vector<8x128xf32> to vector<8x32xf32>
    %cst_55 = arith.constant 2.000000e+00 : f32
    %114 = vector.broadcast %cst_55 : f32 to vector<8x32xf32>
    %115 = arith.mulf %114, %113 : vector<8x32xf32>
    %cst_56 = arith.constant 1.000000e+00 : f32
    %116 = vector.broadcast %cst_56 : f32 to vector<8x32xf32>
    %117 = arith.subf %115, %116 : vector<8x32xf32>
    %118 = vector.extract_strided_slice %110 {offsets = [0, 96], sizes = [8, 32], strides = [1, 1]} : vector<8x128xf32> to vector<8x32xf32>
    %119 = arith.mulf %112, %53 : vector<8x32xf32>
    %120 = arith.mulf %111, %117 : vector<8x32xf32>
    %121 = arith.addf %119, %120 : vector<8x32xf32>
    %122 = math.tanh %121 : vector<8x32xf32>
    %123 = arith.mulf %118, %122 : vector<8x32xf32>
    %124 = arith.truncf %123 : vector<8x32xf32> to vector<8x32xbf16>
    %cst_57 = arith.constant dense<0.000000e+00> : vector<8x128xf32>
    %125 = tpu.matmul %124, %13, %cst_57 {dimension_numbers = #tpu.dot_dimension_numbers<[1], [0], [0], [1], [0, 0, 1, 1], [], []>} : vector<8x32xbf16>, vector<32x128xbf16>, vector<8x128xf32> -> vector<8x128xf32>
    %126 = arith.truncf %80 : vector<8x32xf32> to vector<8x32xbf16>
    %cst_58 = arith.constant dense<0.000000e+00> : vector<8x128xf32>
    %127 = tpu.matmul %126, %15, %cst_58 {dimension_numbers = #tpu.dot_dimension_numbers<[1], [0], [0], [1], [0, 0, 1, 1], [], []>} : vector<8x32xbf16>, vector<32x128xbf16>, vector<8x128xf32> -> vector<8x128xf32>
    %128 = arith.addf %125, %127 : vector<8x128xf32>
    %129 = vector.broadcast %17 : vector<1x128xf32> to vector<8x128xf32>
    %130 = arith.addf %128, %129 : vector<8x128xf32>
    %131 = arith.negf %130 : vector<8x128xf32>
    %132 = math.exp %131 : vector<8x128xf32>
    %cst_59 = arith.constant 1.000000e+00 : f32
    %133 = vector.broadcast %cst_59 : f32 to vector<8x128xf32>
    %134 = arith.addf %133, %132 : vector<8x128xf32>
    %135 = arith.divf %133, %134 : vector<8x128xf32>
    %136 = vector.extract_strided_slice %135 {offsets = [0, 0], sizes = [8, 32], strides = [1, 1]} : vector<8x128xf32> to vector<8x32xf32>
    %137 = vector.extract_strided_slice %135 {offsets = [0, 32], sizes = [8, 32], strides = [1, 1]} : vector<8x128xf32> to vector<8x32xf32>
    %138 = vector.extract_strided_slice %135 {offsets = [0, 64], sizes = [8, 32], strides = [1, 1]} : vector<8x128xf32> to vector<8x32xf32>
    %cst_60 = arith.constant 2.000000e+00 : f32
    %139 = vector.broadcast %cst_60 : f32 to vector<8x32xf32>
    %140 = arith.mulf %139, %138 : vector<8x32xf32>
    %cst_61 = arith.constant 1.000000e+00 : f32
    %141 = vector.broadcast %cst_61 : f32 to vector<8x32xf32>
    %142 = arith.subf %140, %141 : vector<8x32xf32>
    %143 = vector.extract_strided_slice %135 {offsets = [0, 96], sizes = [8, 32], strides = [1, 1]} : vector<8x128xf32> to vector<8x32xf32>
    %144 = arith.mulf %137, %78 : vector<8x32xf32>
    %145 = arith.mulf %136, %142 : vector<8x32xf32>
    %146 = arith.addf %144, %145 : vector<8x32xf32>
    %147 = math.tanh %146 : vector<8x32xf32>
    %148 = arith.mulf %143, %147 : vector<8x32xf32>
    %149 = arith.addi %0, %c1_i32 : i32
    %150 = vector.broadcast %149 : i32 to vector<8x1xi32>
    %151 = arith.cmpi slt, %150, %18 : vector<8x1xi32>
    %152 = vector.shape_cast %151 : vector<8x1xi1> to vector<8x1xi1>
    %153 = vector.broadcast %152 : vector<8x1xi1> to vector<8x32xi1>
    %154 = arith.select %153, %146, %86 : vector<8x32xi1>, vector<8x32xf32>
    %155 = arith.maximumf %90, %146 : vector<8x32xf32>
    %156 = vector.shape_cast %151 : vector<8x1xi1> to vector<8x1xi1>
    %157 = vector.broadcast %156 : vector<8x1xi1> to vector<8x32xi1>
    %158 = arith.select %157, %155, %90 : vector<8x32xi1>, vector<8x32xf32>
    %159 = arith.minimumf %94, %146 : vector<8x32xf32>
    %160 = vector.shape_cast %151 : vector<8x1xi1> to vector<8x1xi1>
    %161 = vector.broadcast %160 : vector<8x1xi1> to vector<8x32xi1>
    %162 = arith.select %161, %159, %94 : vector<8x32xi1>, vector<8x32xf32>
    %163 = arith.addf %98, %146 : vector<8x32xf32>
    %164 = vector.shape_cast %151 : vector<8x1xi1> to vector<8x1xi1>
    %165 = vector.broadcast %164 : vector<8x1xi1> to vector<8x32xi1>
    %166 = arith.select %165, %163, %98 : vector<8x32xi1>, vector<8x32xf32>
    %c2_i32 = arith.constant 2 : i32
    %c8_i32_62 = arith.constant 8 : i32
    %167 = arith.muli %c2_i32, %c8_i32_62 : i32
    %168 = tpu.assume_multiple %167, 8 : i32
    %169 = arith.index_cast %168 : i32 to index
    %c0_63 = arith.constant 0 : index
    %170 = vector.load %arg10[%169, %c0_63] : memref<32x128xf32, #tpu.memory_space<vmem>>, vector<8x128xf32>
    %171 = arith.truncf %123 : vector<8x32xf32> to vector<8x32xbf16>
    %cst_64 = arith.constant dense<0.000000e+00> : vector<8x128xf32>
    %172 = tpu.matmul %171, %11, %cst_64 {dimension_numbers = #tpu.dot_dimension_numbers<[1], [0], [0], [1], [0, 0, 1, 1], [], []>} : vector<8x32xbf16>, vector<32x128xbf16>, vector<8x128xf32> -> vector<8x128xf32>
    %173 = arith.addf %170, %172 : vector<8x128xf32>
    %174 = arith.negf %173 : vector<8x128xf32>
    %175 = math.exp %174 : vector<8x128xf32>
    %cst_65 = arith.constant 1.000000e+00 : f32
    %176 = vector.broadcast %cst_65 : f32 to vector<8x128xf32>
    %177 = arith.addf %176, %175 : vector<8x128xf32>
    %178 = arith.divf %176, %177 : vector<8x128xf32>
    %179 = vector.extract_strided_slice %178 {offsets = [0, 0], sizes = [8, 32], strides = [1, 1]} : vector<8x128xf32> to vector<8x32xf32>
    %180 = vector.extract_strided_slice %178 {offsets = [0, 32], sizes = [8, 32], strides = [1, 1]} : vector<8x128xf32> to vector<8x32xf32>
    %181 = vector.extract_strided_slice %178 {offsets = [0, 64], sizes = [8, 32], strides = [1, 1]} : vector<8x128xf32> to vector<8x32xf32>
    %cst_66 = arith.constant 2.000000e+00 : f32
    %182 = vector.broadcast %cst_66 : f32 to vector<8x32xf32>
    %183 = arith.mulf %182, %181 : vector<8x32xf32>
    %cst_67 = arith.constant 1.000000e+00 : f32
    %184 = vector.broadcast %cst_67 : f32 to vector<8x32xf32>
    %185 = arith.subf %183, %184 : vector<8x32xf32>
    %186 = vector.extract_strided_slice %178 {offsets = [0, 96], sizes = [8, 32], strides = [1, 1]} : vector<8x128xf32> to vector<8x32xf32>
    %187 = arith.mulf %180, %121 : vector<8x32xf32>
    %188 = arith.mulf %179, %185 : vector<8x32xf32>
    %189 = arith.addf %187, %188 : vector<8x32xf32>
    %190 = math.tanh %189 : vector<8x32xf32>
    %191 = arith.mulf %186, %190 : vector<8x32xf32>
    %192 = arith.truncf %191 : vector<8x32xf32> to vector<8x32xbf16>
    %cst_68 = arith.constant dense<0.000000e+00> : vector<8x128xf32>
    %193 = tpu.matmul %192, %13, %cst_68 {dimension_numbers = #tpu.dot_dimension_numbers<[1], [0], [0], [1], [0, 0, 1, 1], [], []>} : vector<8x32xbf16>, vector<32x128xbf16>, vector<8x128xf32> -> vector<8x128xf32>
    %194 = arith.truncf %148 : vector<8x32xf32> to vector<8x32xbf16>
    %cst_69 = arith.constant dense<0.000000e+00> : vector<8x128xf32>
    %195 = tpu.matmul %194, %15, %cst_69 {dimension_numbers = #tpu.dot_dimension_numbers<[1], [0], [0], [1], [0, 0, 1, 1], [], []>} : vector<8x32xbf16>, vector<32x128xbf16>, vector<8x128xf32> -> vector<8x128xf32>
    %196 = arith.addf %193, %195 : vector<8x128xf32>
    %197 = vector.broadcast %17 : vector<1x128xf32> to vector<8x128xf32>
    %198 = arith.addf %196, %197 : vector<8x128xf32>
    %199 = arith.negf %198 : vector<8x128xf32>
    %200 = math.exp %199 : vector<8x128xf32>
    %cst_70 = arith.constant 1.000000e+00 : f32
    %201 = vector.broadcast %cst_70 : f32 to vector<8x128xf32>
    %202 = arith.addf %201, %200 : vector<8x128xf32>
    %203 = arith.divf %201, %202 : vector<8x128xf32>
    %204 = vector.extract_strided_slice %203 {offsets = [0, 0], sizes = [8, 32], strides = [1, 1]} : vector<8x128xf32> to vector<8x32xf32>
    %205 = vector.extract_strided_slice %203 {offsets = [0, 32], sizes = [8, 32], strides = [1, 1]} : vector<8x128xf32> to vector<8x32xf32>
    %206 = vector.extract_strided_slice %203 {offsets = [0, 64], sizes = [8, 32], strides = [1, 1]} : vector<8x128xf32> to vector<8x32xf32>
    %cst_71 = arith.constant 2.000000e+00 : f32
    %207 = vector.broadcast %cst_71 : f32 to vector<8x32xf32>
    %208 = arith.mulf %207, %206 : vector<8x32xf32>
    %cst_72 = arith.constant 1.000000e+00 : f32
    %209 = vector.broadcast %cst_72 : f32 to vector<8x32xf32>
    %210 = arith.subf %208, %209 : vector<8x32xf32>
    %211 = vector.extract_strided_slice %203 {offsets = [0, 96], sizes = [8, 32], strides = [1, 1]} : vector<8x128xf32> to vector<8x32xf32>
    %212 = arith.mulf %205, %146 : vector<8x32xf32>
    %213 = arith.mulf %204, %210 : vector<8x32xf32>
    %214 = arith.addf %212, %213 : vector<8x32xf32>
    %215 = math.tanh %214 : vector<8x32xf32>
    %216 = arith.mulf %211, %215 : vector<8x32xf32>
    %217 = arith.addi %0, %c2_i32 : i32
    %218 = vector.broadcast %217 : i32 to vector<8x1xi32>
    %219 = arith.cmpi slt, %218, %18 : vector<8x1xi32>
    %220 = vector.shape_cast %219 : vector<8x1xi1> to vector<8x1xi1>
    %221 = vector.broadcast %220 : vector<8x1xi1> to vector<8x32xi1>
    %222 = arith.select %221, %214, %154 : vector<8x32xi1>, vector<8x32xf32>
    %223 = arith.maximumf %158, %214 : vector<8x32xf32>
    %224 = vector.shape_cast %219 : vector<8x1xi1> to vector<8x1xi1>
    %225 = vector.broadcast %224 : vector<8x1xi1> to vector<8x32xi1>
    %226 = arith.select %225, %223, %158 : vector<8x32xi1>, vector<8x32xf32>
    %227 = arith.minimumf %162, %214 : vector<8x32xf32>
    %228 = vector.shape_cast %219 : vector<8x1xi1> to vector<8x1xi1>
    %229 = vector.broadcast %228 : vector<8x1xi1> to vector<8x32xi1>
    %230 = arith.select %229, %227, %162 : vector<8x32xi1>, vector<8x32xf32>
    %231 = arith.addf %166, %214 : vector<8x32xf32>
    %232 = vector.shape_cast %219 : vector<8x1xi1> to vector<8x1xi1>
    %233 = vector.broadcast %232 : vector<8x1xi1> to vector<8x32xi1>
    %234 = arith.select %233, %231, %166 : vector<8x32xi1>, vector<8x32xf32>
    %c3_i32 = arith.constant 3 : i32
    %c8_i32_73 = arith.constant 8 : i32
    %235 = arith.muli %c3_i32, %c8_i32_73 : i32
    %236 = tpu.assume_multiple %235, 8 : i32
    %237 = arith.index_cast %236 : i32 to index
    %c0_74 = arith.constant 0 : index
    %238 = vector.load %arg10[%237, %c0_74] : memref<32x128xf32, #tpu.memory_space<vmem>>, vector<8x128xf32>
    %239 = arith.truncf %191 : vector<8x32xf32> to vector<8x32xbf16>
    %cst_75 = arith.constant dense<0.000000e+00> : vector<8x128xf32>
    %240 = tpu.matmul %239, %11, %cst_75 {dimension_numbers = #tpu.dot_dimension_numbers<[1], [0], [0], [1], [0, 0, 1, 1], [], []>} : vector<8x32xbf16>, vector<32x128xbf16>, vector<8x128xf32> -> vector<8x128xf32>
    %241 = arith.addf %238, %240 : vector<8x128xf32>
    %242 = arith.negf %241 : vector<8x128xf32>
    %243 = math.exp %242 : vector<8x128xf32>
    %cst_76 = arith.constant 1.000000e+00 : f32
    %244 = vector.broadcast %cst_76 : f32 to vector<8x128xf32>
    %245 = arith.addf %244, %243 : vector<8x128xf32>
    %246 = arith.divf %244, %245 : vector<8x128xf32>
    %247 = vector.extract_strided_slice %246 {offsets = [0, 0], sizes = [8, 32], strides = [1, 1]} : vector<8x128xf32> to vector<8x32xf32>
    %248 = vector.extract_strided_slice %246 {offsets = [0, 32], sizes = [8, 32], strides = [1, 1]} : vector<8x128xf32> to vector<8x32xf32>
    %249 = vector.extract_strided_slice %246 {offsets = [0, 64], sizes = [8, 32], strides = [1, 1]} : vector<8x128xf32> to vector<8x32xf32>
    %cst_77 = arith.constant 2.000000e+00 : f32
    %250 = vector.broadcast %cst_77 : f32 to vector<8x32xf32>
    %251 = arith.mulf %250, %249 : vector<8x32xf32>
    %cst_78 = arith.constant 1.000000e+00 : f32
    %252 = vector.broadcast %cst_78 : f32 to vector<8x32xf32>
    %253 = arith.subf %251, %252 : vector<8x32xf32>
    %254 = vector.extract_strided_slice %246 {offsets = [0, 96], sizes = [8, 32], strides = [1, 1]} : vector<8x128xf32> to vector<8x32xf32>
    %255 = arith.mulf %248, %189 : vector<8x32xf32>
    %256 = arith.mulf %247, %253 : vector<8x32xf32>
    %257 = arith.addf %255, %256 : vector<8x32xf32>
    %258 = math.tanh %257 : vector<8x32xf32>
    %259 = arith.mulf %254, %258 : vector<8x32xf32>
    %260 = arith.truncf %259 : vector<8x32xf32> to vector<8x32xbf16>
    %cst_79 = arith.constant dense<0.000000e+00> : vector<8x128xf32>
    %261 = tpu.matmul %260, %13, %cst_79 {dimension_numbers = #tpu.dot_dimension_numbers<[1], [0], [0], [1], [0, 0, 1, 1], [], []>} : vector<8x32xbf16>, vector<32x128xbf16>, vector<8x128xf32> -> vector<8x128xf32>
    %262 = arith.truncf %216 : vector<8x32xf32> to vector<8x32xbf16>
    %cst_80 = arith.constant dense<0.000000e+00> : vector<8x128xf32>
    %263 = tpu.matmul %262, %15, %cst_80 {dimension_numbers = #tpu.dot_dimension_numbers<[1], [0], [0], [1], [0, 0, 1, 1], [], []>} : vector<8x32xbf16>, vector<32x128xbf16>, vector<8x128xf32> -> vector<8x128xf32>
    %264 = arith.addf %261, %263 : vector<8x128xf32>
    %265 = vector.broadcast %17 : vector<1x128xf32> to vector<8x128xf32>
    %266 = arith.addf %264, %265 : vector<8x128xf32>
    %267 = arith.negf %266 : vector<8x128xf32>
    %268 = math.exp %267 : vector<8x128xf32>
    %cst_81 = arith.constant 1.000000e+00 : f32
    %269 = vector.broadcast %cst_81 : f32 to vector<8x128xf32>
    %270 = arith.addf %269, %268 : vector<8x128xf32>
    %271 = arith.divf %269, %270 : vector<8x128xf32>
    %272 = vector.extract_strided_slice %271 {offsets = [0, 0], sizes = [8, 32], strides = [1, 1]} : vector<8x128xf32> to vector<8x32xf32>
    %273 = vector.extract_strided_slice %271 {offsets = [0, 32], sizes = [8, 32], strides = [1, 1]} : vector<8x128xf32> to vector<8x32xf32>
    %274 = vector.extract_strided_slice %271 {offsets = [0, 64], sizes = [8, 32], strides = [1, 1]} : vector<8x128xf32> to vector<8x32xf32>
    %cst_82 = arith.constant 2.000000e+00 : f32
    %275 = vector.broadcast %cst_82 : f32 to vector<8x32xf32>
    %276 = arith.mulf %275, %274 : vector<8x32xf32>
    %cst_83 = arith.constant 1.000000e+00 : f32
    %277 = vector.broadcast %cst_83 : f32 to vector<8x32xf32>
    %278 = arith.subf %276, %277 : vector<8x32xf32>
    %279 = vector.extract_strided_slice %271 {offsets = [0, 96], sizes = [8, 32], strides = [1, 1]} : vector<8x128xf32> to vector<8x32xf32>
    %280 = arith.mulf %273, %214 : vector<8x32xf32>
    %281 = arith.mulf %272, %278 : vector<8x32xf32>
    %282 = arith.addf %280, %281 : vector<8x32xf32>
    %283 = math.tanh %282 : vector<8x32xf32>
    %284 = arith.mulf %279, %283 : vector<8x32xf32>
    %285 = arith.addi %0, %c3_i32 : i32
    %286 = vector.broadcast %285 : i32 to vector<8x1xi32>
    %287 = arith.cmpi slt, %286, %18 : vector<8x1xi32>
    %288 = vector.shape_cast %287 : vector<8x1xi1> to vector<8x1xi1>
    %289 = vector.broadcast %288 : vector<8x1xi1> to vector<8x32xi1>
    %290 = arith.select %289, %282, %222 : vector<8x32xi1>, vector<8x32xf32>
    %291 = arith.maximumf %226, %282 : vector<8x32xf32>
    %292 = vector.shape_cast %287 : vector<8x1xi1> to vector<8x1xi1>
    %293 = vector.broadcast %292 : vector<8x1xi1> to vector<8x32xi1>
    %294 = arith.select %293, %291, %226 : vector<8x32xi1>, vector<8x32xf32>
    %295 = arith.minimumf %230, %282 : vector<8x32xf32>
    %296 = vector.shape_cast %287 : vector<8x1xi1> to vector<8x1xi1>
    %297 = vector.broadcast %296 : vector<8x1xi1> to vector<8x32xi1>
    %298 = arith.select %297, %295, %230 : vector<8x32xi1>, vector<8x32xf32>
    %299 = arith.addf %234, %282 : vector<8x32xf32>
    %300 = vector.shape_cast %287 : vector<8x1xi1> to vector<8x1xi1>
    %301 = vector.broadcast %300 : vector<8x1xi1> to vector<8x32xi1>
    %302 = arith.select %301, %299, %234 : vector<8x32xi1>, vector<8x32xf32>
    %c4_i32_84 = arith.constant 4 : i32
    %c0_85 = arith.constant 0 : index
    %c0_86 = arith.constant 0 : index
    %c0_87 = arith.constant 0 : index
    %303 = vector.load %arg11[%c0_85, %c0_86, %c0_87] : memref<2x8x32xf32, #tpu.memory_space<vmem>>, vector<1x8x32xf32>
    %304 = vector.shape_cast %303 : vector<1x8x32xf32> to vector<8x32xf32>
    %305 = vector.shape_cast %259 : vector<8x32xf32> to vector<1x8x32xf32>
    tpu.vector_store %arg11[%c0_85, %c0_86, %c0_87], %305 {strides = array<i32>} : memref<2x8x32xf32, #tpu.memory_space<vmem>>, vector<1x8x32xf32>,
    %c0_88 = arith.constant 0 : index
    %c0_89 = arith.constant 0 : index
    %c0_90 = arith.constant 0 : index
    %306 = vector.load %arg12[%c0_88, %c0_89, %c0_90] : memref<2x8x32xf32, #tpu.memory_space<vmem>>, vector<1x8x32xf32>
    %307 = vector.shape_cast %306 : vector<1x8x32xf32> to vector<8x32xf32>
    %308 = vector.shape_cast %257 : vector<8x32xf32> to vector<1x8x32xf32>
    tpu.vector_store %arg12[%c0_88, %c0_89, %c0_90], %308 {strides = array<i32>} : memref<2x8x32xf32, #tpu.memory_space<vmem>>, vector<1x8x32xf32>,
    %c1_91 = arith.constant 1 : index
    %c0_92 = arith.constant 0 : index
    %c0_93 = arith.constant 0 : index
    %309 = vector.load %arg11[%c1_91, %c0_92, %c0_93] : memref<2x8x32xf32, #tpu.memory_space<vmem>>, vector<1x8x32xf32>
    %310 = vector.shape_cast %309 : vector<1x8x32xf32> to vector<8x32xf32>
    %311 = vector.shape_cast %284 : vector<8x32xf32> to vector<1x8x32xf32>
    tpu.vector_store %arg11[%c1_91, %c0_92, %c0_93], %311 {strides = array<i32>} : memref<2x8x32xf32, #tpu.memory_space<vmem>>, vector<1x8x32xf32>,
    %c1_94 = arith.constant 1 : index
    %c0_95 = arith.constant 0 : index
    %c0_96 = arith.constant 0 : index
    %312 = vector.load %arg12[%c1_94, %c0_95, %c0_96] : memref<2x8x32xf32, #tpu.memory_space<vmem>>, vector<1x8x32xf32>
    %313 = vector.shape_cast %312 : vector<1x8x32xf32> to vector<8x32xf32>
    %314 = vector.shape_cast %282 : vector<8x32xf32> to vector<1x8x32xf32>
    tpu.vector_store %arg12[%c1_94, %c0_95, %c0_96], %314 {strides = array<i32>} : memref<2x8x32xf32, #tpu.memory_space<vmem>>, vector<1x8x32xf32>,
    %c0_97 = arith.constant 0 : index
    %c0_98 = arith.constant 0 : index
    %315 = vector.load %arg13[%c0_97, %c0_98] : memref<8x32xf32, #tpu.memory_space<vmem>>, vector<8x32xf32>
    tpu.vector_store %arg13[%c0_97, %c0_98], %290 {strides = array<i32>} : memref<8x32xf32, #tpu.memory_space<vmem>>, vector<8x32xf32>,
    %c0_99 = arith.constant 0 : index
    %c0_100 = arith.constant 0 : index
    %316 = vector.load %arg14[%c0_99, %c0_100] : memref<8x32xf32, #tpu.memory_space<vmem>>, vector<8x32xf32>
    tpu.vector_store %arg14[%c0_99, %c0_100], %294 {strides = array<i32>} : memref<8x32xf32, #tpu.memory_space<vmem>>, vector<8x32xf32>,
    %c0_101 = arith.constant 0 : index
    %c0_102 = arith.constant 0 : index
    %317 = vector.load %arg15[%c0_101, %c0_102] : memref<8x32xf32, #tpu.memory_space<vmem>>, vector<8x32xf32>
    tpu.vector_store %arg15[%c0_101, %c0_102], %298 {strides = array<i32>} : memref<8x32xf32, #tpu.memory_space<vmem>>, vector<8x32xf32>,
    %c0_103 = arith.constant 0 : index
    %c0_104 = arith.constant 0 : index
    %318 = vector.load %arg16[%c0_103, %c0_104] : memref<8x32xf32, #tpu.memory_space<vmem>>, vector<8x32xf32>
    tpu.vector_store %arg16[%c0_103, %c0_104], %302 {strides = array<i32>} : memref<8x32xf32, #tpu.memory_space<vmem>>, vector<8x32xf32>,
    %c1_i32_105 = arith.constant 1 : i32
    %319 = arith.cmpi eq, %arg0, %c1_i32_105 : i32
    %320 = arith.extui %319 : i1 to i32
    %c0_i32_106 = arith.constant 0 : i32
    %321 = arith.cmpi ne, %320, %c0_i32_106 : i32
    scf.if %321 {
      %c0_107 = arith.constant 0 : index
      %c0_108 = arith.constant 0 : index
      %322 = vector.load %arg16[%c0_107, %c0_108] : memref<8x32xf32, #tpu.memory_space<vmem>>, vector<8x32xf32>
      %c0_109 = arith.constant 0 : index
      %c0_110 = arith.constant 0 : index
      %323 = vector.load %arg8[%c0_109, %c0_110] : memref<8x1xi32, #tpu.memory_space<vmem>>, vector<8x1xi32>
      %324 = arith.sitofp %323 : vector<8x1xi32> to vector<8x1xf32>
      %325 = vector.broadcast %324 : vector<8x1xf32> to vector<8x32xf32>
      %326 = arith.divf %322, %325 : vector<8x32xf32>
      %c0_111 = arith.constant 0 : index
      %c0_112 = arith.constant 0 : index
      %327 = vector.load %arg13[%c0_111, %c0_112] : memref<8x32xf32, #tpu.memory_space<vmem>>, vector<8x32xf32>
      %c0_113 = arith.constant 0 : index
      %c0_114 = arith.constant 0 : index
      %328 = vector.load %arg14[%c0_113, %c0_114] : memref<8x32xf32, #tpu.memory_space<vmem>>, vector<8x32xf32>
      %c0_115 = arith.constant 0 : index
      %c0_116 = arith.constant 0 : index
      %329 = vector.load %arg15[%c0_115, %c0_116] : memref<8x32xf32, #tpu.memory_space<vmem>>, vector<8x32xf32>
      %330 = tpu.concatenate %327, %328, %329, %326 in 1 : vector<8x32xf32>, vector<8x32xf32>, vector<8x32xf32>, vector<8x32xf32> -> vector<8x128xf32>
      %c0_117 = arith.constant 0 : index
      %c0_118 = arith.constant 0 : index
      %331 = vector.load %arg9[%c0_117, %c0_118] : memref<8x128xf32, #tpu.memory_space<vmem>>, vector<8x128xf32>
      tpu.vector_store %arg9[%c0_117, %c0_118], %330 {strides = array<i32>} : memref<8x128xf32, #tpu.memory_space<vmem>>, vector<8x128xf32>,
    } else {
    }
    return
  }
  func.func @transform_0(%arg0: i32) -> (i32, i32) {
    %c0_i32 = arith.constant 0 : i32
    %c0_i32_0 = arith.constant 0 : i32
    return %arg0, %c0_i32 : i32, i32
  }
  func.func @transform_1(%arg0: i32) -> (i32, i32) {
    %c0_i32 = arith.constant 0 : i32
    %c0_i32_0 = arith.constant 0 : i32
    %c0_i32_1 = arith.constant 0 : i32
    return %c0_i32, %c0_i32_0 : i32, i32
  }
  func.func @transform_2(%arg0: i32) -> (i32, i32) {
    %c0_i32 = arith.constant 0 : i32
    %c0_i32_0 = arith.constant 0 : i32
    %c0_i32_1 = arith.constant 0 : i32
    return %c0_i32, %c0_i32_0 : i32, i32
  }
  func.func @transform_3(%arg0: i32) -> (i32, i32) {
    %c0_i32 = arith.constant 0 : i32
    %c0_i32_0 = arith.constant 0 : i32
    %c0_i32_1 = arith.constant 0 : i32
    return %c0_i32, %c0_i32_0 : i32, i32
  }
  func.func @transform_4(%arg0: i32) -> (i32, i32, i32) {
    %c0_i32 = arith.constant 0 : i32
    %c0_i32_0 = arith.constant 0 : i32
    %c0_i32_1 = arith.constant 0 : i32
    %c0_i32_2 = arith.constant 0 : i32
    return %c0_i32, %c0_i32_0, %c0_i32_1 : i32, i32, i32
  }
  func.func @transform_5(%arg0: i32) -> (i32, i32, i32) {
    %c0_i32 = arith.constant 0 : i32
    %c0_i32_0 = arith.constant 0 : i32
    %c0_i32_1 = arith.constant 0 : i32
    %c0_i32_2 = arith.constant 0 : i32
    return %c0_i32, %c0_i32_0, %c0_i32_1 : i32, i32, i32
  }
  func.func @transform_6(%arg0: i32) -> (i32, i32, i32) {
    %c0_i32 = arith.constant 0 : i32
    %c0_i32_0 = arith.constant 0 : i32
    %c0_i32_1 = arith.constant 0 : i32
    %c0_i32_2 = arith.constant 0 : i32
    return %c0_i32, %c0_i32_0, %c0_i32_1 : i32, i32, i32
  }
  func.func @transform_7(%arg0: i32) -> (i32, i32) {
    %c0_i32 = arith.constant 0 : i32
    %c0_i32_0 = arith.constant 0 : i32
    %c0_i32_1 = arith.constant 0 : i32
    return %c0_i32, %c0_i32_0 : i32, i32
  }
  func.func @transform_8(%arg0: i32) -> (i32, i32) {
    %c0_i32 = arith.constant 0 : i32
    %c0_i32_0 = arith.constant 0 : i32
    %c0_i32_1 = arith.constant 0 : i32
    return %c0_i32, %c0_i32_0 : i32, i32
  }
}

</mosaic_0001>

<llo_original>
// kernel: tpu_custom_call.1
$region0: #{tpu_custom_call.1}
  #allocation0 [shape = 'u32[]', space=smem, size = 0x4, offset = 0x4, fixed_abs, tag = 'smem constant byte address 0x4 - core index']
  #allocation1 [shape = 'u32[144,128]{1,0:T(1,128)}', space=vmem, size = 0x12000, scoped, tag = 'internal scratch']
  #allocation2 [shape = 'f32[32,128]{1,0:T(8,128)}', space=vmem, size = 0x4000, scoped, tag = 'scratch operand']
  #allocation3 [shape = 'f32[2,8,32]{2,1,0:T(8,128)}', space=vmem, size = 0x2000, scoped, tag = 'scratch operand']
  #allocation4 [shape = 'f32[2,8,32]{2,1,0:T(8,128)}', space=vmem, size = 0x2000, scoped, tag = 'scratch operand']
  #allocation5 [shape = 'f32[8,32]{1,0:T(8,128)}', space=vmem, size = 0x1000, scoped, tag = 'scratch operand']
  #allocation6 [shape = 'f32[8,32]{1,0:T(8,128)}', space=vmem, size = 0x1000, scoped, tag = 'scratch operand']
  #allocation7 [shape = 'f32[8,32]{1,0:T(8,128)}', space=vmem, size = 0x1000, scoped, tag = 'scratch operand']
  #allocation8 [shape = 'f32[8,32]{1,0:T(8,128)}', space=vmem, size = 0x1000, scoped, tag = 'scratch operand']
  %s0 = inlined_call_operand.hbm [shape: bf16[64,32], index: 0, kind: input, shape index: {}]
  %s1 = inlined_call_operand.hbm [shape: bf16[32,128], index: 1, kind: input, shape index: {}]
  %s2 = inlined_call_operand.hbm [shape: bf16[32,128], index: 2, kind: input, shape index: {}]
  %s3 = inlined_call_operand.hbm [shape: f32[1,128], index: 3, kind: input, shape index: {}]
  %s4 = inlined_call_operand.hbm [shape: bf16[1,32,128], index: 4, kind: input, shape index: {}]
  %s5 = inlined_call_operand.hbm [shape: bf16[1,32,128], index: 5, kind: input, shape index: {}]
  %s6 = inlined_call_operand.hbm [shape: f32[1,1,128], index: 6, kind: input, shape index: {}]
  %s7 = inlined_call_operand.hbm [shape: s32[8,1], index: 7, kind: input, shape index: {}]
  %s8 = inlined_call_operand.hbm [shape: f32[8,128], index: 8, kind: output, shape index: {}]
  %s9 = sld [smem:[#allocation0]]
  $region105: #{tpu_custom_call.1} parent=0
    _
  %s11 = ssub.s32 1, %s9
  %s12 = scalar_select 0, %s11, %s9
  $region1: #{tpu_custom_call.1} parent=0
    #allocation9 [shape = 'u8[16384]{0}', space=vmem, size = 0x4000, scoped, tag = 'input window, operand 0']
    #allocation10 [shape = 's32[2]{0}', space=sflag, size = 0x8, scoped, tag = 'scoped memory for tpu_custom_call.1']
    #allocation11 [shape = 's32[2]{0}', space=sflag, size = 0x8, scoped, tag = 'scoped memory for tpu_custom_call.1']
    #allocation12 [shape = 'u8[8192]{0}', space=vmem, size = 0x2000, scoped, tag = 'input window, operand 1, single buffered']
    #allocation13 [shape = 's32[1]{0}', space=sflag, size = 0x4, scoped, tag = 'scoped memory for tpu_custom_call.1']
    #allocation14 [shape = 'u8[8192]{0}', space=vmem, size = 0x2000, scoped, tag = 'input window, operand 2, single buffered']
    #allocation15 [shape = 'u8[512]{0}', space=vmem, size = 0x400, scoped, tag = 'input window, operand 3, single buffered']
    #allocation16 [shape = 's32[1]{0}', space=sflag, size = 0x4, scoped, tag = 'scoped memory for tpu_custom_call.1']
    #allocation17 [shape = 'u8[8192]{0}', space=vmem, size = 0x2000, scoped, tag = 'input window, operand 4, single buffered']
    #allocation18 [shape = 'u8[8192]{0}', space=vmem, size = 0x2000, scoped, tag = 'input window, operand 5, single buffered']
    #allocation19 [shape = 's32[1]{0}', space=sflag, size = 0x4, scoped, tag = 'scoped memory for tpu_custom_call.1']
    #allocation20 [shape = 'u8[512]{0}', space=vmem, size = 0x400, scoped, tag = 'input window, operand 6, single buffered']
    #allocation21 [shape = 'u8[4096]{0}', space=vmem, size = 0x1000, scoped, tag = 'input window, operand 7, single buffered']
    #allocation22 [shape = 's32[1]{0}', space=sflag, size = 0x4, scoped, tag = 'scoped memory for tpu_custom_call.1']
    #allocation23 [shape = 'u8[4096]{0}', space=vmem, size = 0x1000, scoped, tag = 'output window, operand 0, single buffered']
    %13 = vsyncpa [#allocation10], 0
    %s14 = scalar_lea.sflag [#allocation10], 1
    %15 = vsyncpa %s14, 0
    %16 = vsyncpa [#allocation13], 0
    %17 = vsyncpa [#allocation16], 0
    %18 = vsyncpa [#allocation19], 0
    %19 = vsyncpa [#allocation22], 0
    %20 = vsyncpa [#allocation11], 0
    loop: start=0, step=1, limit=4
    $region2: #{tpu_custom_call.1} parent=1 // loop_pre_header
      _
    $region3: #{tpu_custom_call.1} parent=1 // loop_header
      %s22 = sphi 0, %s26
      %p23 = scmp.ge.s32.totalorder %s22, 4
      %s32 = sphi 0, %s34
      %s35 = sphi 0, %s32
      %s36 = sphi 0, %s35
      %s52 = sphi 0, %s36
      %s56 = sphi 0, %s56
      %s58 = sphi 0, %s56
      %s59 = sphi 0, %s58
      %s73 = sphi 0, %s59
      %s77 = sphi 0, %s77
      %s79 = sphi 0, %s77
      %s80 = sphi 0, %s79
      %s94 = sphi 0, %s80
      %s98 = sphi 0, %s98
      %s100 = sphi 0, %s98
      %s101 = sphi 0, %s100
      %s115 = sphi 0, %s101
      %s119 = sphi 0, %s119
      %s121 = sphi 0, %s119
      %s122 = sphi 0, %s121
      %s136 = sphi 0, %s122
      %s140 = sphi 0, %s140
      %s142 = sphi 0, %s140
      %s143 = sphi 0, %s142
      %s157 = sphi 0, %s143
      %s161 = sphi 0, %s161
      %s163 = sphi 0, %s161
      %s164 = sphi 0, %s163
      %s178 = sphi 0, %s164
      %s182 = sphi 0, %s182
      %s184 = sphi 0, %s182
      %s185 = sphi 0, %s184
      %s199 = sphi 0, %s185
      %s203 = sphi 0, %s203
      %s205 = sphi 0, %s203
      %s206 = sphi 0, %s205
      %s220 = sphi 0, %s206
    $region4: #{tpu_custom_call.1} parent=1 // loop_header_branch
      %25 = sbr.rel (%p23) target = $region8
    $region5: #{tpu_custom_call.1} parent=1 // loop_body
      %s27 = ssub.s32 %s22, 1
      %s28 = ssub.s32 %s22, 2
      %s29 = sadd.s32 %s22, 1
      %s30 = ssub.s32 %s22, %s29
      %p31 = scmp.eq.s32.totalorder %s30, 0
      %s33 = sadd.s32 %s32, 1
      %s34 = scalar_select %p31, %s32, %s33
      %p37 = pneg %p31
      %p38 = scmp.eq.s32.totalorder %s22, 1
      %p39 = por %p37, %p38
      %p40 = scmp.ne.s32.totalorder %s32, %s35
      %p41 = scmp.eq.s32.totalorder %s22, 0
      %p42 = por %p40, %p41
      %p43 = scmp.ne.s32.totalorder %s32, %s35
      %p44 = scmp.eq.s32.totalorder %s27, 1
      %p45 = por %p43, %p44
      %p46 = scmp.ne.s32.totalorder %s35, %s36
      %p47 = scmp.eq.s32.totalorder %s27, 0
      %p48 = por %p46, %p47
      %p49 = scmp.ne.s32.totalorder %s35, %s36
      %p50 = scmp.eq.s32.totalorder %s28, 1
      %p51 = por %p49, %p50
      %p53 = scmp.ne.s32.totalorder %s36, %s52
      %p54 = scmp.eq.s32.totalorder %s28, 0
      %p55 = por %p53, %p54
      %s57 = sadd.s32 %s56, 1
      %p60 = scmp.eq.s32.totalorder %s22, 1
      %p61 = scmp.ne.s32.totalorder %s56, %s58
      %p62 = scmp.eq.s32.totalorder %s22, 0
      %p63 = por %p61, %p62
      %p64 = scmp.ne.s32.totalorder %s56, %s58
      %p65 = scmp.eq.s32.totalorder %s27, 1
      %p66 = por %p64, %p65
      %p67 = scmp.ne.s32.totalorder %s58, %s59
      %p68 = scmp.eq.s32.totalorder %s27, 0
      %p69 = por %p67, %p68
      %p70 = scmp.ne.s32.totalorder %s58, %s59
      %p71 = scmp.eq.s32.totalorder %s28, 1
      %p72 = por %p70, %p71
      %p74 = scmp.ne.s32.totalorder %s59, %s73
      %p75 = scmp.eq.s32.totalorder %s28, 0
      %p76 = por %p74, %p75
      %s78 = sadd.s32 %s77, 1
      %p81 = scmp.eq.s32.totalorder %s22, 1
      %p82 = scmp.ne.s32.totalorder %s77, %s79
      %p83 = scmp.eq.s32.totalorder %s22, 0
      %p84 = por %p82, %p83
      %p85 = scmp.ne.s32.totalorder %s77, %s79
      %p86 = scmp.eq.s32.totalorder %s27, 1
      %p87 = por %p85, %p86
      %p88 = scmp.ne.s32.totalorder %s79, %s80
      %p89 = scmp.eq.s32.totalorder %s27, 0
      %p90 = por %p88, %p89
      %p91 = scmp.ne.s32.totalorder %s79, %s80
      %p92 = scmp.eq.s32.totalorder %s28, 1
      %p93 = por %p91, %p92
      %p95 = scmp.ne.s32.totalorder %s80, %s94
      %p96 = scmp.eq.s32.totalorder %s28, 0
      %p97 = por %p95, %p96
      %s99 = sadd.s32 %s98, 1
      %p102 = scmp.eq.s32.totalorder %s22, 1
      %p103 = scmp.ne.s32.totalorder %s98, %s100
      %p104 = scmp.eq.s32.totalorder %s22, 0
      %p105 = por %p103, %p104
      %p106 = scmp.ne.s32.totalorder %s98, %s100
      %p107 = scmp.eq.s32.totalorder %s27, 1
      %p108 = por %p106, %p107
      %p109 = scmp.ne.s32.totalorder %s100, %s101
      %p110 = scmp.eq.s32.totalorder %s27, 0
      %p111 = por %p109, %p110
      %p112 = scmp.ne.s32.totalorder %s100, %s101
      %p113 = scmp.eq.s32.totalorder %s28, 1
      %p114 = por %p112, %p113
      %p116 = scmp.ne.s32.totalorder %s101, %s115
      %p117 = scmp.eq.s32.totalorder %s28, 0
      %p118 = por %p116, %p117
      %s120 = sadd.s32 %s119, 1
      %p123 = scmp.eq.s32.totalorder %s22, 1
      %p124 = scmp.ne.s32.totalorder %s119, %s121
      %p125 = scmp.eq.s32.totalorder %s22, 0
      %p126 = por %p124, %p125
      %p127 = scmp.ne.s32.totalorder %s119, %s121
      %p128 = scmp.eq.s32.totalorder %s27, 1
      %p129 = por %p127, %p128
      %p130 = scmp.ne.s32.totalorder %s121, %s122
      %p131 = scmp.eq.s32.totalorder %s27, 0
      %p132 = por %p130, %p131
      %p133 = scmp.ne.s32.totalorder %s121, %s122
      %p134 = scmp.eq.s32.totalorder %s28, 1
      %p135 = por %p133, %p134
      %p137 = scmp.ne.s32.totalorder %s122, %s136
      %p138 = scmp.eq.s32.totalorder %s28, 0
      %p139 = por %p137, %p138
      %s141 = sadd.s32 %s140, 1
      %p144 = scmp.eq.s32.totalorder %s22, 1
      %p145 = scmp.ne.s32.totalorder %s140, %s142
      %p146 = scmp.eq.s32.totalorder %s22, 0
      %p147 = por %p145, %p146
      %p148 = scmp.ne.s32.totalorder %s140, %s142
      %p149 = scmp.eq.s32.totalorder %s27, 1
      %p150 = por %p148, %p149
      %p151 = scmp.ne.s32.totalorder %s142, %s143
      %p152 = scmp.eq.s32.totalorder %s27, 0
      %p153 = por %p151, %p152
      %p154 = scmp.ne.s32.totalorder %s142, %s143
      %p155 = scmp.eq.s32.totalorder %s28, 1
      %p156 = por %p154, %p155
      %p158 = scmp.ne.s32.totalorder %s143, %s157
      %p159 = scmp.eq.s32.totalorder %s28, 0
      %p160 = por %p158, %p159
      %s162 = sadd.s32 %s161, 1
      %p165 = scmp.eq.s32.totalorder %s22, 1
      %p166 = scmp.ne.s32.totalorder %s161, %s163
      %p167 = scmp.eq.s32.totalorder %s22, 0
      %p168 = por %p166, %p167
      %p169 = scmp.ne.s32.totalorder %s161, %s163
      %p170 = scmp.eq.s32.totalorder %s27, 1
      %p171 = por %p169, %p170
      %p172 = scmp.ne.s32.totalorder %s163, %s164
      %p173 = scmp.eq.s32.totalorder %s27, 0
      %p174 = por %p172, %p173
      %p175 = scmp.ne.s32.totalorder %s163, %s164
      %p176 = scmp.eq.s32.totalorder %s28, 1
      %p177 = por %p175, %p176
      %p179 = scmp.ne.s32.totalorder %s164, %s178
      %p180 = scmp.eq.s32.totalorder %s28, 0
      %p181 = por %p179, %p180
      %s183 = sadd.s32 %s182, 1
      %p186 = scmp.eq.s32.totalorder %s22, 1
      %p187 = scmp.ne.s32.totalorder %s182, %s184
      %p188 = scmp.eq.s32.totalorder %s22, 0
      %p189 = por %p187, %p188
      %p190 = scmp.ne.s32.totalorder %s182, %s184
      %p191 = scmp.eq.s32.totalorder %s27, 1
      %p192 = por %p190, %p191
      %p193 = scmp.ne.s32.totalorder %s184, %s185
      %p194 = scmp.eq.s32.totalorder %s27, 0
      %p195 = por %p193, %p194
      %p196 = scmp.ne.s32.totalorder %s184, %s185
      %p197 = scmp.eq.s32.totalorder %s28, 1
      %p198 = por %p196, %p197
      %p200 = scmp.ne.s32.totalorder %s185, %s199
      %p201 = scmp.eq.s32.totalorder %s28, 0
      %p202 = por %p200, %p201
      %s204 = sadd.s32 %s203, 1
      %p207 = scmp.eq.s32.totalorder %s22, 1
      %p208 = scmp.ne.s32.totalorder %s203, %s205
      %p209 = scmp.eq.s32.totalorder %s22, 0
      %p210 = por %p208, %p209
      %p211 = scmp.ne.s32.totalorder %s203, %s205
      %p212 = scmp.eq.s32.totalorder %s27, 1
      %p213 = por %p211, %p212
      %p214 = scmp.ne.s32.totalorder %s205, %s206
      %p215 = scmp.eq.s32.totalorder %s27, 0
      %p216 = por %p214, %p215
      %p217 = scmp.ne.s32.totalorder %s205, %s206
      %p218 = scmp.eq.s32.totalorder %s28, 1
      %p219 = por %p217, %p218
      %p221 = scmp.ne.s32.totalorder %s206, %s220
      %p222 = scmp.eq.s32.totalorder %s28, 0
      %p223 = por %p221, %p222
      %p224 = scmp.le.s32.totalorder 1, %s22
      %p225 = scmp.lt.s32.totalorder %s22, 3
      %p226 = pnand %p224, %p225
      %p227 = pneg %p226
      // Predicated region
      $region9: #{tpu_custom_call.1} parent=5 // pred_check
        _
      $region10: #{tpu_custom_call.1} parent=5 // pred_check_branch
        %229 = sbr.rel (%p226) target = $region12
      $region11: #{tpu_custom_call.1} parent=5 // pred_region
        %s230 = ssub.s32 %s22, 1
        // Predicated region
        $region13: #{tpu_custom_call.1} parent=11 // pred_check
          %p231 = pneg %p69
        $region14: #{tpu_custom_call.1} parent=11 // pred_check_branch
          %233 = sbr.rel (%p231) target = $region16
        $region15: #{tpu_custom_call.1} parent=11 // pred_region
          %s235 = ssub.s32 256, 256
          %236 = vsyncadd [#allocation13], %s235
          %s237 = sshll.u32 [#allocation12], 4
          %s238 = int_to_ptr.vmem [resolvable:$true] %s237
          %243 = dma.hbm_to_vmem [thread:$0]  %s1, 256, %s238, [#allocation13], 64, 64, 4
        $region16: #{tpu_custom_call.1} parent=11 // pred_fallthru
          _
        // Predicated region
        $region17: #{tpu_custom_call.1} parent=11 // pred_check
          %p244 = pneg %p90
        $region18: #{tpu_custom_call.1} parent=11 // pred_check_branch
          %246 = sbr.rel (%p244) target = $region20
        $region19: #{tpu_custom_call.1} parent=11 // pred_region
          %s248 = ssub.s32 256, 256
          %249 = vsyncadd [#allocation13], %s248
          %s250 = sshll.u32 [#allocation14], 4
          %s251 = int_to_ptr.vmem [resolvable:$true] %s250
          %256 = dma.hbm_to_vmem [thread:$0]  %s2, 256, %s251, [#allocation13], 64, 64, 4
        $region20: #{tpu_custom_call.1} parent=11 // pred_fallthru
          _
        // Predicated region
        $region21: #{tpu_custom_call.1} parent=11 // pred_check
          %p257 = pneg %p111
        $region22: #{tpu_custom_call.1} parent=11 // pred_check_branch
          %259 = sbr.rel (%p257) target = $region24
        $region23: #{tpu_custom_call.1} parent=11 // pred_region
          %s261 = ssub.s32 16, 16
          %262 = vsyncadd [#allocation16], %s261
          %s264 = sshll.u32 [#allocation15], 4
          %s265 = int_to_ptr.vmem [resolvable:$true] %s264
          %267 = dma.hbm_to_vmem [thread:$0]  %s3, 16, %s265, [#allocation16]
        $region24: #{tpu_custom_call.1} parent=11 // pred_fallthru
          _
        // Predicated region
        $region25: #{tpu_custom_call.1} parent=11 // pred_check
          %p268 = pneg %p132
        $region26: #{tpu_custom_call.1} parent=11 // pred_check_branch
          %270 = sbr.rel (%p268) target = $region28
        $region27: #{tpu_custom_call.1} parent=11 // pred_region
          %s272 = ssub.s32 256, 256
          %273 = vsyncadd [#allocation16], %s272
          %s274 = sshll.u32 [#allocation17], 4
          %s275 = int_to_ptr.vmem [resolvable:$true] %s274
          %280 = dma.hbm_to_vmem [thread:$0]  %s4, 256, %s275, [#allocation16], 64, 64, 4
        $region28: #{tpu_custom_call.1} parent=11 // pred_fallthru
          _
        // Predicated region
        $region29: #{tpu_custom_call.1} parent=11 // pred_check
          %p281 = pneg %p153
        $region30: #{tpu_custom_call.1} parent=11 // pred_check_branch
          %283 = sbr.rel (%p281) target = $region32
        $region31: #{tpu_custom_call.1} parent=11 // pred_region
          %s285 = ssub.s32 256, 256
          %286 = vsyncadd [#allocation19], %s285
          %s287 = sshll.u32 [#allocation18], 4
          %s288 = int_to_ptr.vmem [resolvable:$true] %s287
          %293 = dma.hbm_to_vmem [thread:$0]  %s5, 256, %s288, [#allocation19], 64, 64, 4
        $region32: #{tpu_custom_call.1} parent=11 // pred_fallthru
          _
        // Predicated region
        $region33: #{tpu_custom_call.1} parent=11 // pred_check
          %p294 = pneg %p174
        $region34: #{tpu_custom_call.1} parent=11 // pred_check_branch
          %296 = sbr.rel (%p294) target = $region36
        $region35: #{tpu_custom_call.1} parent=11 // pred_region
          %s298 = ssub.s32 16, 16
          %299 = vsyncadd [#allocation19], %s298
          %s301 = sshll.u32 [#allocation20], 4
          %s302 = int_to_ptr.vmem [resolvable:$true] %s301
          %304 = dma.hbm_to_vmem [thread:$0]  %s6, 16, %s302, [#allocation19]
        $region36: #{tpu_custom_call.1} parent=11 // pred_fallthru
          _
        // Predicated region
        $region37: #{tpu_custom_call.1} parent=11 // pred_check
          %p305 = pneg %p195
        $region38: #{tpu_custom_call.1} parent=11 // pred_check_branch
          %307 = sbr.rel (%p305) target = $region40
        $region39: #{tpu_custom_call.1} parent=11 // pred_region
          %s309 = ssub.s32 128, 128
          %310 = vsyncadd [#allocation22], %s309
          %s312 = sshll.u32 [#allocation21], 4
          %s313 = int_to_ptr.vmem [resolvable:$true] %s312
          %315 = dma.hbm_to_vmem [thread:$0]  %s7, 128, %s313, [#allocation22]
        $region40: #{tpu_custom_call.1} parent=11 // pred_fallthru
          _
      $region12: #{tpu_custom_call.1} parent=5 // pred_fallthru
        _
      %p316 = scmp.lt.s32.totalorder %s22, 2
      // Predicated region
      $region41: #{tpu_custom_call.1} parent=5 // pred_check
        %p317 = pneg %p316
      $region42: #{tpu_custom_call.1} parent=5 // pred_check_branch
        %319 = sbr.rel (%p317) target = $region44
      $region43: #{tpu_custom_call.1} parent=5 // pred_region
        // Predicated region
        $region45: #{tpu_custom_call.1} parent=43 // pred_check
          %p320 = pneg %p42
        $region46: #{tpu_custom_call.1} parent=43 // pred_check_branch
          %322 = sbr.rel (%p320) target = $region48
        $region47: #{tpu_custom_call.1} parent=43 // pred_region
          %s323 = sand.u32 %s32, 1
          %s324 = scalar_lea.sflag [#allocation10], %s323
          %s325 = sand.u32 %s32, 1
          %s326 = smul.addr %s325, 16
          %s327 = scalar_lea.vmem [#allocation9], %s326
          %s328 = smul.u32 4, %s22
          %s330 = ssub.s32 256, 256
          %331 = vsyncadd %s324, %s330
          %s332 = smul.addr %s328, 64
          %s333 = scalar_lea.hbm %s0, %s332
          %s334 = sshll.u32 %s327, 4
          %s335 = int_to_ptr.vmem [resolvable:$true] %s334
          %340 = dma.hbm_to_vmem [thread:$0]  %s333, 256, %s335, %s324, 64, 64, 4
        $region48: #{tpu_custom_call.1} parent=43 // pred_fallthru
          _
      $region44: #{tpu_custom_call.1} parent=5 // pred_fallthru
        _
      %p341 = scmp.le.s32.totalorder 1, %s22
      %p342 = scmp.lt.s32.totalorder %s22, 3
      %p343 = pnand %p341, %p342
      %p344 = pneg %p343
      // Predicated region
      $region49: #{tpu_custom_call.1} parent=5 // pred_check
        _
      $region50: #{tpu_custom_call.1} parent=5 // pred_check_branch
        %346 = sbr.rel (%p343) target = $region52
      $region51: #{tpu_custom_call.1} parent=5 // pred_region
        %s347 = ssub.s32 %s22, 1
        %s348 = sand.u32 %s35, 1
        %s349 = scalar_lea.sflag [#allocation10], %s348
        %s350 = sand.u32 %s35, 1
        %s351 = smul.addr %s350, 16
        %s352 = scalar_lea.vmem [#allocation9], %s351
        // Predicated region
        $region53: #{tpu_custom_call.1} parent=51 // pred_check
          %p353 = pneg %p48
        $region54: #{tpu_custom_call.1} parent=51 // pred_check_branch
          %355 = sbr.rel (%p353) target = $region56
        $region55: #{tpu_custom_call.1} parent=51 // pred_region
          %356 = dma.done %s349, 256
        $region56: #{tpu_custom_call.1} parent=51 // pred_fallthru
          _
        // Predicated region
        $region57: #{tpu_custom_call.1} parent=51 // pred_check
          %p357 = pneg %p69
        $region58: #{tpu_custom_call.1} parent=51 // pred_check_branch
          %359 = sbr.rel (%p357) target = $region60
        $region59: #{tpu_custom_call.1} parent=51 // pred_region
          %360 = dma.done [#allocation13], 256
        $region60: #{tpu_custom_call.1} parent=51 // pred_fallthru
          _
        // Predicated region
        $region61: #{tpu_custom_call.1} parent=51 // pred_check
          %p361 = pneg %p90
        $region62: #{tpu_custom_call.1} parent=51 // pred_check_branch
          %363 = sbr.rel (%p361) target = $region64
        $region63: #{tpu_custom_call.1} parent=51 // pred_region
          %364 = dma.done [#allocation13], 256
        $region64: #{tpu_custom_call.1} parent=51 // pred_fallthru
          _
        // Predicated region
        $region65: #{tpu_custom_call.1} parent=51 // pred_check
          %p365 = pneg %p111
        $region66: #{tpu_custom_call.1} parent=51 // pred_check_branch
          %367 = sbr.rel (%p365) target = $region68
        $region67: #{tpu_custom_call.1} parent=51 // pred_region
          %368 = dma.done [#allocation16], 16
        $region68: #{tpu_custom_call.1} parent=51 // pred_fallthru
          _
        // Predicated region
        $region69: #{tpu_custom_call.1} parent=51 // pred_check
          %p369 = pneg %p132
        $region70: #{tpu_custom_call.1} parent=51 // pred_check_branch
          %371 = sbr.rel (%p369) target = $region72
        $region71: #{tpu_custom_call.1} parent=51 // pred_region
          %372 = dma.done [#allocation16], 256
        $region72: #{tpu_custom_call.1} parent=51 // pred_fallthru
          _
        // Predicated region
        $region73: #{tpu_custom_call.1} parent=51 // pred_check
          %p373 = pneg %p153
        $region74: #{tpu_custom_call.1} parent=51 // pred_check_branch
          %375 = sbr.rel (%p373) target = $region76
        $region75: #{tpu_custom_call.1} parent=51 // pred_region
          %376 = dma.done [#allocation19], 256
        $region76: #{tpu_custom_call.1} parent=51 // pred_fallthru
          _
        // Predicated region
        $region77: #{tpu_custom_call.1} parent=51 // pred_check
          %p377 = pneg %p174
        $region78: #{tpu_custom_call.1} parent=51 // pred_check_branch
          %379 = sbr.rel (%p377) target = $region80
        $region79: #{tpu_custom_call.1} parent=51 // pred_region
          %380 = dma.done [#allocation19], 16
        $region80: #{tpu_custom_call.1} parent=51 // pred_fallthru
          _
        // Predicated region
        $region81: #{tpu_custom_call.1} parent=51 // pred_check
          %p381 = pneg %p195
        $region82: #{tpu_custom_call.1} parent=51 // pred_check_branch
          %383 = sbr.rel (%p381) target = $region84
        $region83: #{tpu_custom_call.1} parent=51 // pred_region
          %384 = dma.done [#allocation22], 128
        $region84: #{tpu_custom_call.1} parent=51 // pred_fallthru
          _
        %s385 = sand.u32 %s35, 1
        %s386 = scalar_lea.sflag [#allocation10], %s385
        %s387 = sand.u32 %s35, 1
        %s388 = smul.addr %s387, 16
        %s389 = scalar_lea.vmem [#allocation9], %s388
        %p390 = pneg %p48
        %p391 = pneg %p45
        %p392 = pneg %p69
        %p393 = pneg %p66
        %p394 = pneg %p90
        %p395 = pneg %p87
        %p396 = pneg %p111
        %p397 = pneg %p108
        %p398 = pneg %p132
        %p399 = pneg %p129
        %p400 = pneg %p153
        %p401 = pneg %p150
        %p402 = pneg %p174
        %p403 = pneg %p171
        %p404 = pneg %p195
        %p405 = pneg %p192
        %p406 = pneg %p216
        %p407 = pneg %p213
        %s408 = smul.u32 4, %s27
        %s410 = smul.u32 %s27, 4
        %p411 = scmp.eq.s32.totalorder %s27, 0
        // Predicated region
        $region85: #{tpu_custom_call.1} parent=51 // pred_check
          %p412 = pneg %p411
        $region86: #{tpu_custom_call.1} parent=51 // pred_check_branch
          %414 = sbr.rel (%p412) target = $region88
        $region87: #{tpu_custom_call.1} parent=51 // pred_region
          %vm415 = vcmask 261120
          %416 = vst.msk [vmem:[#allocation3] sm:$0xff] %vm415, 0.0
          %417 = vst.msk [vmem:[#allocation3 + $0x8] sm:$0xff] %vm415, 0.0
          %418 = vst.msk [vmem:[#allocation4] sm:$0xff] %vm415, 0.0
          %419 = vst.msk [vmem:[#allocation4 + $0x8] sm:$0xff] %vm415, 0.0
          %420 = vst.msk [vmem:[#allocation5] sm:$0xff] %vm415, 0.0
          %421 = vst.msk [vmem:[#allocation6] sm:$0xff] %vm415, -inf
          %422 = vst.msk [vmem:[#allocation7] sm:$0xff] %vm415, inf
          %423 = vst.msk [vmem:[#allocation8] sm:$0xff] %vm415, 0.0
        $region88: #{tpu_custom_call.1} parent=51 // pred_fallthru
          _
        %v424 = vld [vmem:[%s352] sm:$0xf]
        %v425 = vld [vmem:[%s352 + $0x4] sm:$0xf]
        %v426 = vld [vmem:[%s352 + $0x8] sm:$0xf]
        %v427 = vld [vmem:[%s352 + $0xc] sm:$0xf]
        %v428 = vld [vmem:[#allocation12] sm:$0xf]
        %v429 = vld [vmem:[#allocation12 + $0x4] sm:$0xf]
        %v430 = vld [vmem:[#allocation12 + $0x8] sm:$0xf]
        %v431 = vld [vmem:[#allocation12 + $0xc] sm:$0xf]
        %v432 = vld [vmem:[#allocation15] sm:$0x1]
        %v434 = vlaneseq
        %v435 = vshrl.u32 %v434, 7
        %v436 = vsub.s32 0, %v435
        %v437 = vrot.slane %v432, %v436
        %v443 = vunpack.c.l.b16 %v424
        %v444 = vunpack.c.l.b16 %v425
        %v445 = vunpack.c.l.b16 %v426
        %v446 = vunpack.c.l.b16 %v427
        %v447 = vpack.c.b16 %v444, %v443
        %v448 = vpack.c.b16 %v446, %v445
        %v453 = vunpack.c.l.b16 %v428
        %v454 = vunpack.c.l.b16 %v429
        %v455 = vunpack.c.l.b16 %v430
        %v456 = vunpack.c.l.b16 %v431
        %v457 = vpack.c.b16 %v454, %v453
        %v458 = vpack.c.b16 %v456, %v455
        %vm461 = vcmask 261120
        %v463 = vsel %vm461, %v447, 0
        %v466 = vsel %vm461, %v448, 0
        %468 = vmatprep.subr.bf16.mxu0 0
        %469 = vmatpush1.bf16.msra.mxu0 %v457
        %470 = vmatprep.subr.bf16.mxu0 0
        %471 = vmatpush1.bf16.msra.mxu0 %v458
        %472 = vmatprep.subr.bf16.mxu0 0
        %473 = vmatpush1.bf16.msra.mxu0 0
        %474 = vmatprep.subr.bf16.mxu0 0
        %475 = vmatpush1.bf16.msra.mxu0 0
        %476 = vmatprep.subr.bf16.mxu0 0
        %477 = vmatpush1.bf16.msra.mxu0 0
        %478 = vmatprep.subr.bf16.mxu0 0
        %479 = vmatpush1.bf16.msra.mxu0 0
        %480 = vmatprep.subr.bf16.mxu0 0
        %481 = vmatpush1.bf16.msra.mxu0 0
        %482 = vmatprep.subr.bf16.mxu0 0
        %483 = vmatpush1.bf16.msra.mxu0 0
        %484 = vmatprep.subr.bf16.mxu0 0
        %485 = vmatpush1.bf16.msra.mxu0 0
        %486 = vmatprep.subr.bf16.mxu0 0
        %487 = vmatpush1.bf16.msra.mxu0 0
        %488 = vmatprep.subr.bf16.mxu0 0
        %489 = vmatpush1.bf16.msra.mxu0 0
        %490 = vmatprep.subr.bf16.mxu0 0
        %491 = vmatpush1.bf16.msra.mxu0 0
        %492 = vmatprep.subr.bf16.mxu0 0
        %493 = vmatpush1.bf16.msra.mxu0 0
        %494 = vmatprep.subr.bf16.mxu0 0
        %495 = vmatpush1.bf16.msra.mxu0 0
        %496 = vmatprep.subr.bf16.mxu0 0
        %497 = vmatpush1.bf16.msra.mxu0 0
        %498 = vmatprep.subr.bf16.mxu0 0
        %499 = vmatpush1.bf16.msra.mxu0 0
        %500 = vmatprep.mubr.bf16.mxu0 0
        %501 = vmatmul.mubr.bf16.gmra.mrb[0].mxu0 %v463
        %v502 = vpop.f32.mrb[0].mxu0
        %v503 = vadd.f32 %v437, %v502
        %v504 = vpop.f32.mrb[0].mxu0
        %v505 = vpop.f32.mrb[0].mxu0
        %v506 = vadd.f32 %v437, %v505
        %v507 = vpop.f32.mrb[0].mxu0
        %508 = vmatprep.mubr.bf16.mxu0 0
        %509 = vmatmul.mubr.bf16.gmra.mrb[0].mxu0 %v466
        %v510 = vpop.f32.mrb[0].mxu0
        %v511 = vadd.f32 %v437, %v510
        %v512 = vpop.f32.mrb[0].mxu0
        %v513 = vpop.f32.mrb[0].mxu0
        %v514 = vadd.f32 %v437, %v513
        %v515 = vpop.f32.mrb[0].mxu0
        %516 = vdwg.mxu0
        %517 = vst [vmem:[#allocation2] sm:$0xff] %v503
        %518 = vst [vmem:[#allocation2 + $0x8] sm:$0xff] %v506
        %519 = vst [vmem:[#allocation2 + $0x10] sm:$0xff] %v511
        %520 = vst [vmem:[#allocation2 + $0x18] sm:$0xff] %v514
        %v521 = vld [vmem:[#allocation14] sm:$0xf]
        %v522 = vld [vmem:[#allocation14 + $0x4] sm:$0xf]
        %v523 = vld [vmem:[#allocation14 + $0x8] sm:$0xf]
        %v524 = vld [vmem:[#allocation14 + $0xc] sm:$0xf]
        %v525 = vld [vmem:[#allocation17] sm:$0xf]
        %v526 = vld [vmem:[#allocation17 + $0x4] sm:$0xf]
        %v527 = vld [vmem:[#allocation17 + $0x8] sm:$0xf]
        %v528 = vld [vmem:[#allocation17 + $0xc] sm:$0xf]
        %v529 = vld [vmem:[#allocation18] sm:$0xf]
        %v530 = vld [vmem:[#allocation18 + $0x4] sm:$0xf]
        %v531 = vld [vmem:[#allocation18 + $0x8] sm:$0xf]
        %v532 = vld [vmem:[#allocation18 + $0xc] sm:$0xf]
        %v533 = vld [vmem:[#allocation20] sm:$0x1]
        %v534 = vld [vmem:[#allocation21] sm:$0xff]
        %v535 = vld [vmem:[#allocation3] sm:$0xff]
        %s536 = scalar_lea.vmem [#allocation3], 8
        %v537 = vld [vmem:[%s536] sm:$0xff]
        %v538 = vld [vmem:[#allocation4] sm:$0xff]
        %s539 = scalar_lea.vmem [#allocation4], 8
        %v540 = vld [vmem:[%s539] sm:$0xff]
        %v541 = vld [vmem:[#allocation5] sm:$0xff]
        %v542 = vld [vmem:[#allocation6] sm:$0xff]
        %v543 = vld [vmem:[#allocation7] sm:$0xff]
        %v544 = vld [vmem:[#allocation8] sm:$0xff]
        %v545 = vld [vmem:[#allocation2] sm:$0xff]
        %v546 = vpack.c.bf16 %v535, %v535
        %v551 = vunpack.c.l.b16 %v521
        %v552 = vunpack.c.l.b16 %v522
        %v553 = vunpack.c.l.b16 %v523
        %v554 = vunpack.c.l.b16 %v524
        %v555 = vpack.c.b16 %v552, %v551
        %v556 = vpack.c.b16 %v554, %v553
        %v560 = vsel %vm461, %v546, 0
        %562 = vmatprep.subr.bf16.mxu0 0
        %563 = vmatpush1.bf16.msra.mxu0 %v555
        %564 = vmatprep.subr.bf16.mxu0 0
        %565 = vmatpush1.bf16.msra.mxu0 %v556
        %566 = vmatprep.subr.bf16.mxu0 0
        %567 = vmatpush1.bf16.msra.mxu0 0
        %568 = vmatprep.subr.bf16.mxu0 0
        %569 = vmatpush1.bf16.msra.mxu0 0
        %570 = vmatprep.subr.bf16.mxu0 0
        %571 = vmatpush1.bf16.msra.mxu0 0
        %572 = vmatprep.subr.bf16.mxu0 0
        %573 = vmatpush1.bf16.msra.mxu0 0
        %574 = vmatprep.subr.bf16.mxu0 0
        %575 = vmatpush1.bf16.msra.mxu0 0
        %576 = vmatprep.subr.bf16.mxu0 0
        %577 = vmatpush1.bf16.msra.mxu0 0
        %578 = vmatprep.subr.bf16.mxu0 0
        %579 = vmatpush1.bf16.msra.mxu0 0
        %580 = vmatprep.subr.bf16.mxu0 0
        %581 = vmatpush1.bf16.msra.mxu0 0
        %582 = vmatprep.subr.bf16.mxu0 0
        %583 = vmatpush1.bf16.msra.mxu0 0
        %584 = vmatprep.subr.bf16.mxu0 0
        %585 = vmatpush1.bf16.msra.mxu0 0
        %586 = vmatprep.subr.bf16.mxu0 0
        %587 = vmatpush1.bf16.msra.mxu0 0
        %588 = vmatprep.subr.bf16.mxu0 0
        %589 = vmatpush1.bf16.msra.mxu0 0
        %590 = vmatprep.subr.bf16.mxu0 0
        %591 = vmatpush1.bf16.msra.mxu0 0
        %592 = vmatprep.subr.bf16.mxu0 0
        %593 = vmatpush1.bf16.msra.mxu0 0
        %594 = vmatprep.mubr.bf16.mxu0 0
        %595 = vmatmul.mubr.bf16.gmra.mrb[0].mxu0 %v560
        %v596 = vpop.f32.mrb[0].mxu0
        %v597 = vadd.f32 0.0, %v596
        %v598 = vpop.f32.mrb[0].mxu0
        %v599 = vpop.f32.mrb[0].mxu0
        %v600 = vpop.f32.mrb[0].mxu0
        %601 = vdwg.mxu0
        %v602 = vadd.f32 %v545, %v597
        %v603 = vxor.u32 %v602, 2147483648
        %v604 = vmul.f32 %v603, 1.442695
        %v605 = vpow.pop %v604
        %v606 = vadd.f32 %v605, 1.0
        %v607 = vrcp.pop %v606
        %v608 = vmul.f32 1.0, %v607
        %v609 = vmul.f32 %v608, 2.0
        %v610 = vsub.f32 %v609, 1.0
        %612 = vrot.lane.b32.xlu0 %v538, 32
        %v613 = vpop.permute.xlu0 %612
        %v615 = vmul.f32 %v608, %v613
        %617 = vrot.lane.b32.xlu0 %v610, 64
        %v618 = vpop.permute.xlu0 %617
        %v620 = vmul.f32 %v608, %v618
        %622 = vrot.lane.b32.xlu0 %v620, 32
        %v623 = vpop.permute.xlu0 %622
        %v625 = vadd.f32 %v615, %v623
        %v626 = vtanh.pop %v625
        %628 = vrot.lane.b32.xlu0 %v626, 64
        %v629 = vpop.permute.xlu0 %628
        %v631 = vmul.f32 %v608, %v629
        %v632 = vpack.c.bf16 %v631, %v631
        %v633 = vpack.c.bf16 %v537, %v537
        %v638 = vunpack.c.l.b16 %v529
        %v639 = vunpack.c.l.b16 %v530
        %v640 = vunpack.c.l.b16 %v531
        %v641 = vunpack.c.l.b16 %v532
        %v642 = vpack.c.b16 %v639, %v638
        %v643 = vpack.c.b16 %v641, %v640
        %v647 = vsel %vm461, %v633, 0
        %649 = vmatprep.subr.bf16.mxu0 0
        %650 = vmatpush1.bf16.msra.mxu0 %v642
        %651 = vmatprep.subr.bf16.mxu0 0
        %652 = vmatpush1.bf16.msra.mxu0 %v643
        %653 = vmatprep.subr.bf16.mxu0 0
        %654 = vmatpush1.bf16.msra.mxu0 0
        %655 = vmatprep.subr.bf16.mxu0 0
        %656 = vmatpush1.bf16.msra.mxu0 0
        %657 = vmatprep.subr.bf16.mxu0 0
        %658 = vmatpush1.bf16.msra.mxu0 0
        %659 = vmatprep.subr.bf16.mxu0 0
        %660 = vmatpush1.bf16.msra.mxu0 0
        %661 = vmatprep.subr.bf16.mxu0 0
        %662 = vmatpush1.bf16.msra.mxu0 0
        %663 = vmatprep.subr.bf16.mxu0 0
        %664 = vmatpush1.bf16.msra.mxu0 0
        %665 = vmatprep.subr.bf16.mxu0 0
        %666 = vmatpush1.bf16.msra.mxu0 0
        %667 = vmatprep.subr.bf16.mxu0 0
        %668 = vmatpush1.bf16.msra.mxu0 0
        %669 = vmatprep.subr.bf16.mxu0 0
        %670 = vmatpush1.bf16.msra.mxu0 0
        %671 = vmatprep.subr.bf16.mxu0 0
        %672 = vmatpush1.bf16.msra.mxu0 0
        %673 = vmatprep.subr.bf16.mxu0 0
        %674 = vmatpush1.bf16.msra.mxu0 0
        %675 = vmatprep.subr.bf16.mxu0 0
        %676 = vmatpush1.bf16.msra.mxu0 0
        %677 = vmatprep.subr.bf16.mxu0 0
        %678 = vmatpush1.bf16.msra.mxu0 0
        %679 = vmatprep.subr.bf16.mxu0 0
        %680 = vmatpush1.bf16.msra.mxu0 0
        %681 = vmatprep.mubr.bf16.mxu0 0
        %682 = vmatmul.mubr.bf16.gmra.mrb[0].mxu0 %v647
        %v683 = vpop.f32.mrb[0].mxu0
        %v684 = vadd.f32 0.0, %v683
        %v685 = vpop.f32.mrb[0].mxu0
        %v686 = vpop.f32.mrb[0].mxu0
        %v687 = vpop.f32.mrb[0].mxu0
        %688 = vdwg.mxu0
        %690 = vrot.lane.b32.xlu0 %v632, 32
        %v691 = vpop.permute.xlu0 %690
        %v696 = vunpack.c.l.b16 %v525
        %v697 = vunpack.c.l.b16 %v526
        %v698 = vunpack.c.l.b16 %v527
        %v699 = vunpack.c.l.b16 %v528
        %v700 = vpack.c.b16 %v697, %v696
        %v701 = vpack.c.b16 %v699, %v698
        %v705 = vsel %vm461, %v691, 0
        %707 = vmatprep.subr.bf16.mxu0 0
        %708 = vmatpush1.bf16.msra.mxu0 %v700
        %709 = vmatprep.subr.bf16.mxu0 0
        %710 = vmatpush1.bf16.msra.mxu0 %v701
        %711 = vmatprep.subr.bf16.mxu0 0
        %712 = vmatpush1.bf16.msra.mxu0 0
        %713 = vmatprep.subr.bf16.mxu0 0
        %714 = vmatpush1.bf16.msra.mxu0 0
        %715 = vmatprep.subr.bf16.mxu0 0
        %716 = vmatpush1.bf16.msra.mxu0 0
        %717 = vmatprep.subr.bf16.mxu0 0
        %718 = vmatpush1.bf16.msra.mxu0 0
        %719 = vmatprep.subr.bf16.mxu0 0
        %720 = vmatpush1.bf16.msra.mxu0 0
        %721 = vmatprep.subr.bf16.mxu0 0
        %722 = vmatpush1.bf16.msra.mxu0 0
        %723 = vmatprep.subr.bf16.mxu0 0
        %724 = vmatpush1.bf16.msra.mxu0 0
        %725 = vmatprep.subr.bf16.mxu0 0
        %726 = vmatpush1.bf16.msra.mxu0 0
        %727 = vmatprep.subr.bf16.mxu0 0
        %728 = vmatpush1.bf16.msra.mxu0 0
        %729 = vmatprep.subr.bf16.mxu0 0
        %730 = vmatpush1.bf16.msra.mxu0 0
        %731 = vmatprep.subr.bf16.mxu0 0
        %732 = vmatpush1.bf16.msra.mxu0 0
        %733 = vmatprep.subr.bf16.mxu0 0
        %734 = vmatpush1.bf16.msra.mxu0 0
        %735 = vmatprep.subr.bf16.mxu0 0
        %736 = vmatpush1.bf16.msra.mxu0 0
        %737 = vmatprep.subr.bf16.mxu0 0
        %738 = vmatpush1.bf16.msra.mxu0 0
        %739 = vmatprep.mubr.bf16.mxu0 0
        %740 = vmatmul.mubr.bf16.gmra.mrb[0].mxu0 %v705
        %v741 = vpop.f32.mrb[0].mxu0
        %v742 = vadd.f32 %v684, %v741
        %v743 = vpop.f32.mrb[0].mxu0
        %v744 = vpop.f32.mrb[0].mxu0
        %v745 = vpop.f32.mrb[0].mxu0
        %746 = vdwg.mxu0
        %v748 = vlaneseq
        %v749 = vshrl.u32 %v748, 7
        %v750 = vsub.s32 0, %v749
        %v751 = vrot.slane %v533, %v750
        %v753 = vadd.f32 %v742, %v751
        %v754 = vxor.u32 %v753, 2147483648
        %v755 = vmul.f32 %v754, 1.442695
        %v756 = vpow.pop %v755
        %v757 = vadd.f32 %v756, 1.0
        %v758 = vrcp.pop %v757
        %v759 = vmul.f32 1.0, %v758
        %v760 = vmul.f32 %v759, 2.0
        %v761 = vsub.f32 %v760, 1.0
        %763 = vrot.lane.b32.xlu0 %v540, 32
        %v764 = vpop.permute.xlu0 %763
        %v766 = vmul.f32 %v759, %v764
        %768 = vrot.lane.b32.xlu0 %v761, 64
        %v769 = vpop.permute.xlu0 %768
        %v771 = vmul.f32 %v759, %v769
        %773 = vrot.lane.b32.xlu0 %v771, 32
        %v774 = vpop.permute.xlu0 %773
        %v776 = vadd.f32 %v766, %v774
        %v777 = vtanh.pop %v776
        %779 = vrot.lane.b32.xlu0 %v777, 64
        %v780 = vpop.permute.xlu0 %779
        %v782 = vmul.f32 %v759, %v780
        %v783 = vstv %s410
        %vm784 = vcmp.lt.s32.totalorder %v783, %v534
        %v785 = vsel %vm784, 1, 0
        %786 = vset.pattern.permute.xlu0 0
        %787 = vperm.xlu0 %786, %v785
        %v788 = vpop.permute.xlu0 %787
        %vm789 = vcmp.eq.s32.totalorder %v788, 1
        %791 = vrot.lane.b32.xlu0 %v541, 32
        %v792 = vpop.permute.xlu0 %791
        %v794 = vsel %vm789, %v776, %v792
        %796 = vrot.lane.b32.xlu0 %v776, 96
        %v797 = vpop.permute.xlu0 %796
        %v799 = vmax.f32 %v542, %v797
        %v800 = vsel %vm789, %v799, %v542
        %v801 = vmin.f32 %v543, %v797
        %v802 = vsel %vm789, %v801, %v543
        %v803 = vadd.f32 %v544, %v797
        %v804 = vsel %vm789, %v803, %v544
        %s805 = scalar_lea.vmem [#allocation2], 8
        %v806 = vld [vmem:[%s805] sm:$0xff]
        %807 = vmatprep.subr.bf16.mxu0 0
        %808 = vmatpush1.bf16.msra.mxu0 %v555
        %809 = vmatprep.subr.bf16.mxu0 0
        %810 = vmatpush1.bf16.msra.mxu0 %v556
        %811 = vmatprep.subr.bf16.mxu0 0
        %812 = vmatpush1.bf16.msra.mxu0 0
        %813 = vmatprep.subr.bf16.mxu0 0
        %814 = vmatpush1.bf16.msra.mxu0 0
        %815 = vmatprep.subr.bf16.mxu0 0
        %816 = vmatpush1.bf16.msra.mxu0 0
        %817 = vmatprep.subr.bf16.mxu0 0
        %818 = vmatpush1.bf16.msra.mxu0 0
        %819 = vmatprep.subr.bf16.mxu0 0
        %820 = vmatpush1.bf16.msra.mxu0 0
        %821 = vmatprep.subr.bf16.mxu0 0
        %822 = vmatpush1.bf16.msra.mxu0 0
        %823 = vmatprep.subr.bf16.mxu0 0
        %824 = vmatpush1.bf16.msra.mxu0 0
        %825 = vmatprep.subr.bf16.mxu0 0
        %826 = vmatpush1.bf16.msra.mxu0 0
        %827 = vmatprep.subr.bf16.mxu0 0
        %828 = vmatpush1.bf16.msra.mxu0 0
        %829 = vmatprep.subr.bf16.mxu0 0
        %830 = vmatpush1.bf16.msra.mxu0 0
        %831 = vmatprep.subr.bf16.mxu0 0
        %832 = vmatpush1.bf16.msra.mxu0 0
        %833 = vmatprep.subr.bf16.mxu0 0
        %834 = vmatpush1.bf16.msra.mxu0 0
        %835 = vmatprep.subr.bf16.mxu0 0
        %836 = vmatpush1.bf16.msra.mxu0 0
        %837 = vmatprep.subr.bf16.mxu0 0
        %838 = vmatpush1.bf16.msra.mxu0 0
        %839 = vmatprep.mubr.bf16.mxu0 0
        %840 = vmatmul.mubr.bf16.gmra.mrb[0].mxu0 %v705
        %v841 = vpop.f32.mrb[0].mxu0
        %v842 = vadd.f32 0.0, %v841
        %v843 = vpop.f32.mrb[0].mxu0
        %v844 = vpop.f32.mrb[0].mxu0
        %v845 = vpop.f32.mrb[0].mxu0
        %846 = vdwg.mxu0
        %v847 = vadd.f32 %v806, %v842
        %v848 = vxor.u32 %v847, 2147483648
        %v849 = vmul.f32 %v848, 1.442695
        %v850 = vpow.pop %v849
        %v851 = vadd.f32 %v850, 1.0
        %v852 = vrcp.pop %v851
        %v853 = vmul.f32 1.0, %v852
        %v854 = vmul.f32 %v853, 2.0
        %v855 = vsub.f32 %v854, 1.0
        %v856 = vmul.f32 %v853, %v625
        %858 = vrot.lane.b32.xlu0 %v855, 64
        %v859 = vpop.permute.xlu0 %858
        %v861 = vmul.f32 %v853, %v859
        %863 = vrot.lane.b32.xlu0 %v861, 32
        %v864 = vpop.permute.xlu0 %863
        %v866 = vadd.f32 %v856, %v864
        %v867 = vtanh.pop %v866
        %869 = vrot.lane.b32.xlu0 %v867, 64
        %v870 = vpop.permute.xlu0 %869
        %v872 = vmul.f32 %v853, %v870
        %v873 = vpack.c.bf16 %v872, %v872
        %v874 = vpack.c.bf16 %v782, %v782
        %876 = vrot.lane.b32.xlu0 %v874, 32
        %v877 = vpop.permute.xlu0 %876
        %v879 = vsel %vm461, %v877, 0
        %881 = vmatprep.subr.bf16.mxu0 0
        %882 = vmatpush1.bf16.msra.mxu0 %v642
        %883 = vmatprep.subr.bf16.mxu0 0
        %884 = vmatpush1.bf16.msra.mxu0 %v643
        %885 = vmatprep.subr.bf16.mxu0 0
        %886 = vmatpush1.bf16.msra.mxu0 0
        %887 = vmatprep.subr.bf16.mxu0 0
        %888 = vmatpush1.bf16.msra.mxu0 0
        %889 = vmatprep.subr.bf16.mxu0 0
        %890 = vmatpush1.bf16.msra.mxu0 0
        %891 = vmatprep.subr.bf16.mxu0 0
        %892 = vmatpush1.bf16.msra.mxu0 0
        %893 = vmatprep.subr.bf16.mxu0 0
        %894 = vmatpush1.bf16.msra.mxu0 0
        %895 = vmatprep.subr.bf16.mxu0 0
        %896 = vmatpush1.bf16.msra.mxu0 0
        %897 = vmatprep.subr.bf16.mxu0 0
        %898 = vmatpush1.bf16.msra.mxu0 0
        %899 = vmatprep.subr.bf16.mxu0 0
        %900 = vmatpush1.bf16.msra.mxu0 0
        %901 = vmatprep.subr.bf16.mxu0 0
        %902 = vmatpush1.bf16.msra.mxu0 0
        %903 = vmatprep.subr.bf16.mxu0 0
        %904 = vmatpush1.bf16.msra.mxu0 0
        %905 = vmatprep.subr.bf16.mxu0 0
        %906 = vmatpush1.bf16.msra.mxu0 0
        %907 = vmatprep.subr.bf16.mxu0 0
        %908 = vmatpush1.bf16.msra.mxu0 0
        %909 = vmatprep.subr.bf16.mxu0 0
        %910 = vmatpush1.bf16.msra.mxu0 0
        %911 = vmatprep.subr.bf16.mxu0 0
        %912 = vmatpush1.bf16.msra.mxu0 0
        %913 = vmatprep.mubr.bf16.mxu0 0
        %914 = vmatmul.mubr.bf16.gmra.mrb[0].mxu0 %v879
        %v915 = vpop.f32.mrb[0].mxu0
        %v916 = vadd.f32 0.0, %v915
        %v917 = vpop.f32.mrb[0].mxu0
        %v918 = vpop.f32.mrb[0].mxu0
        %v919 = vpop.f32.mrb[0].mxu0
        %920 = vdwg.mxu0
        %922 = vrot.lane.b32.xlu0 %v873, 32
        %v923 = vpop.permute.xlu0 %922
        %v925 = vsel %vm461, %v923, 0
        %927 = vmatprep.subr.bf16.mxu0 0
        %928 = vmatpush1.bf16.msra.mxu0 %v700
        %929 = vmatprep.subr.bf16.mxu0 0
        %930 = vmatpush1.bf16.msra.mxu0 %v701
        %931 = vmatprep.subr.bf16.mxu0 0
        %932 = vmatpush1.bf16.msra.mxu0 0
        %933 = vmatprep.subr.bf16.mxu0 0
        %934 = vmatpush1.bf16.msra.mxu0 0
        %935 = vmatprep.subr.bf16.mxu0 0
        %936 = vmatpush1.bf16.msra.mxu0 0
        %937 = vmatprep.subr.bf16.mxu0 0
        %938 = vmatpush1.bf16.msra.mxu0 0
        %939 = vmatprep.subr.bf16.mxu0 0
        %940 = vmatpush1.bf16.msra.mxu0 0
        %941 = vmatprep.subr.bf16.mxu0 0
        %942 = vmatpush1.bf16.msra.mxu0 0
        %943 = vmatprep.subr.bf16.mxu0 0
        %944 = vmatpush1.bf16.msra.mxu0 0
        %945 = vmatprep.subr.bf16.mxu0 0
        %946 = vmatpush1.bf16.msra.mxu0 0
        %947 = vmatprep.subr.bf16.mxu0 0
        %948 = vmatpush1.bf16.msra.mxu0 0
        %949 = vmatprep.subr.bf16.mxu0 0
        %950 = vmatpush1.bf16.msra.mxu0 0
        %951 = vmatprep.subr.bf16.mxu0 0
        %952 = vmatpush1.bf16.msra.mxu0 0
        %953 = vmatprep.subr.bf16.mxu0 0
        %954 = vmatpush1.bf16.msra.mxu0 0
        %955 = vmatprep.subr.bf16.mxu0 0
        %956 = vmatpush1.bf16.msra.mxu0 0
        %957 = vmatprep.subr.bf16.mxu0 0
        %958 = vmatpush1.bf16.msra.mxu0 0
        %959 = vmatprep.mubr.bf16.mxu0 0
        %960 = vmatmul.mubr.bf16.gmra.mrb[0].mxu0 %v925
        %v961 = vpop.f32.mrb[0].mxu0
        %v962 = vadd.f32 %v916, %v961
        %v963 = vpop.f32.mrb[0].mxu0
        %v964 = vpop.f32.mrb[0].mxu0
        %v965 = vpop.f32.mrb[0].mxu0
        %966 = vdwg.mxu0
        %v967 = vadd.f32 %v962, %v751
        %v968 = vxor.u32 %v967, 2147483648
        %v969 = vmul.f32 %v968, 1.442695
        %v970 = vpow.pop %v969
        %v971 = vadd.f32 %v970, 1.0
        %v972 = vrcp.pop %v971
        %v973 = vmul.f32 1.0, %v972
        %v974 = vmul.f32 %v973, 2.0
        %v975 = vsub.f32 %v974, 1.0
        %v976 = vmul.f32 %v973, %v776
        %978 = vrot.lane.b32.xlu0 %v975, 64
        %v979 = vpop.permute.xlu0 %978
        %v981 = vmul.f32 %v973, %v979
        %983 = vrot.lane.b32.xlu0 %v981, 32
        %v984 = vpop.permute.xlu0 %983
        %v986 = vadd.f32 %v976, %v984
        %v987 = vtanh.pop %v986
        %989 = vrot.lane.b32.xlu0 %v987, 64
        %v990 = vpop.permute.xlu0 %989
        %v992 = vmul.f32 %v973, %v990
        %s993 = sadd.s32 %s410, 1
        %v994 = vstv %s993
        %vm995 = vcmp.lt.s32.totalorder %v994, %v534
        %v996 = vsel %vm995, 1, 0
        %997 = vset.pattern.permute.xlu0 0
        %998 = vperm.xlu0 %997, %v996
        %v999 = vpop.permute.xlu0 %998
        %vm1000 = vcmp.eq.s32.totalorder %v999, 1
        %v1001 = vsel %vm1000, %v986, %v794
        %1003 = vrot.lane.b32.xlu0 %v986, 96
        %v1004 = vpop.permute.xlu0 %1003
        %v1006 = vmax.f32 %v800, %v1004
        %v1007 = vsel %vm1000, %v1006, %v800
        %v1008 = vmin.f32 %v802, %v1004
        %v1009 = vsel %vm1000, %v1008, %v802
        %v1010 = vadd.f32 %v804, %v1004
        %v1011 = vsel %vm1000, %v1010, %v804
        %s1012 = scalar_lea.vmem [#allocation2], 16
        %v1013 = vld [vmem:[%s1012] sm:$0xff]
        %1014 = vmatprep.subr.bf16.mxu0 0
        %1015 = vmatpush1.bf16.msra.mxu0 %v555
        %1016 = vmatprep.subr.bf16.mxu0 0
        %1017 = vmatpush1.bf16.msra.mxu0 %v556
        %1018 = vmatprep.subr.bf16.mxu0 0
        %1019 = vmatpush1.bf16.msra.mxu0 0
        %1020 = vmatprep.subr.bf16.mxu0 0
        %1021 = vmatpush1.bf16.msra.mxu0 0
        %1022 = vmatprep.subr.bf16.mxu0 0
        %1023 = vmatpush1.bf16.msra.mxu0 0
        %1024 = vmatprep.subr.bf16.mxu0 0
        %1025 = vmatpush1.bf16.msra.mxu0 0
        %1026 = vmatprep.subr.bf16.mxu0 0
        %1027 = vmatpush1.bf16.msra.mxu0 0
        %1028 = vmatprep.subr.bf16.mxu0 0
        %1029 = vmatpush1.bf16.msra.mxu0 0
        %1030 = vmatprep.subr.bf16.mxu0 0
        %1031 = vmatpush1.bf16.msra.mxu0 0
        %1032 = vmatprep.subr.bf16.mxu0 0
        %1033 = vmatpush1.bf16.msra.mxu0 0
        %1034 = vmatprep.subr.bf16.mxu0 0
        %1035 = vmatpush1.bf16.msra.mxu0 0
        %1036 = vmatprep.subr.bf16.mxu0 0
        %1037 = vmatpush1.bf16.msra.mxu0 0
        %1038 = vmatprep.subr.bf16.mxu0 0
        %1039 = vmatpush1.bf16.msra.mxu0 0
        %1040 = vmatprep.subr.bf16.mxu0 0
        %1041 = vmatpush1.bf16.msra.mxu0 0
        %1042 = vmatprep.subr.bf16.mxu0 0
        %1043 = vmatpush1.bf16.msra.mxu0 0
        %1044 = vmatprep.subr.bf16.mxu0 0
        %1045 = vmatpush1.bf16.msra.mxu0 0
        %1046 = vmatprep.mubr.bf16.mxu0 0
        %1047 = vmatmul.mubr.bf16.gmra.mrb[0].mxu0 %v925
        %v1048 = vpop.f32.mrb[0].mxu0
        %v1049 = vadd.f32 0.0, %v1048
        %v1050 = vpop.f32.mrb[0].mxu0
        %v1051 = vpop.f32.mrb[0].mxu0
        %v1052 = vpop.f32.mrb[0].mxu0
        %1053 = vdwg.mxu0
        %v1054 = vadd.f32 %v1013, %v1049
        %v1055 = vxor.u32 %v1054, 2147483648
        %v1056 = vmul.f32 %v1055, 1.442695
        %v1057 = vpow.pop %v1056
        %v1058 = vadd.f32 %v1057, 1.0
        %v1059 = vrcp.pop %v1058
        %v1060 = vmul.f32 1.0, %v1059
        %v1061 = vmul.f32 %v1060, 2.0
        %v1062 = vsub.f32 %v1061, 1.0
        %v1063 = vmul.f32 %v1060, %v866
        %1065 = vrot.lane.b32.xlu0 %v1062, 64
        %v1066 = vpop.permute.xlu0 %1065
        %v1068 = vmul.f32 %v1060, %v1066
        %1070 = vrot.lane.b32.xlu0 %v1068, 32
        %v1071 = vpop.permute.xlu0 %1070
        %v1073 = vadd.f32 %v1063, %v1071
        %v1074 = vtanh.pop %v1073
        %1076 = vrot.lane.b32.xlu0 %v1074, 64
        %v1077 = vpop.permute.xlu0 %1076
        %v1079 = vmul.f32 %v1060, %v1077
        %v1080 = vpack.c.bf16 %v1079, %v1079
        %v1081 = vpack.c.bf16 %v992, %v992
        %1083 = vrot.lane.b32.xlu0 %v1081, 32
        %v1084 = vpop.permute.xlu0 %1083
        %v1086 = vsel %vm461, %v1084, 0
        %1088 = vmatprep.subr.bf16.mxu0 0
        %1089 = vmatpush1.bf16.msra.mxu0 %v642
        %1090 = vmatprep.subr.bf16.mxu0 0
        %1091 = vmatpush1.bf16.msra.mxu0 %v643
        %1092 = vmatprep.subr.bf16.mxu0 0
        %1093 = vmatpush1.bf16.msra.mxu0 0
        %1094 = vmatprep.subr.bf16.mxu0 0
        %1095 = vmatpush1.bf16.msra.mxu0 0
        %1096 = vmatprep.subr.bf16.mxu0 0
        %1097 = vmatpush1.bf16.msra.mxu0 0
        %1098 = vmatprep.subr.bf16.mxu0 0
        %1099 = vmatpush1.bf16.msra.mxu0 0
        %1100 = vmatprep.subr.bf16.mxu0 0
        %1101 = vmatpush1.bf16.msra.mxu0 0
        %1102 = vmatprep.subr.bf16.mxu0 0
        %1103 = vmatpush1.bf16.msra.mxu0 0
        %1104 = vmatprep.subr.bf16.mxu0 0
        %1105 = vmatpush1.bf16.msra.mxu0 0
        %1106 = vmatprep.subr.bf16.mxu0 0
        %1107 = vmatpush1.bf16.msra.mxu0 0
        %1108 = vmatprep.subr.bf16.mxu0 0
        %1109 = vmatpush1.bf16.msra.mxu0 0
        %1110 = vmatprep.subr.bf16.mxu0 0
        %1111 = vmatpush1.bf16.msra.mxu0 0
        %1112 = vmatprep.subr.bf16.mxu0 0
        %1113 = vmatpush1.bf16.msra.mxu0 0
        %1114 = vmatprep.subr.bf16.mxu0 0
        %1115 = vmatpush1.bf16.msra.mxu0 0
        %1116 = vmatprep.subr.bf16.mxu0 0
        %1117 = vmatpush1.bf16.msra.mxu0 0
        %1118 = vmatprep.subr.bf16.mxu0 0
        %1119 = vmatpush1.bf16.msra.mxu0 0
        %1120 = vmatprep.mubr.bf16.mxu0 0
        %1121 = vmatmul.mubr.bf16.gmra.mrb[0].mxu0 %v1086
        %v1122 = vpop.f32.mrb[0].mxu0
        %v1123 = vadd.f32 0.0, %v1122
        %v1124 = vpop.f32.mrb[0].mxu0
        %v1125 = vpop.f32.mrb[0].mxu0
        %v1126 = vpop.f32.mrb[0].mxu0
        %1127 = vdwg.mxu0
        %1129 = vrot.lane.b32.xlu0 %v1080, 32
        %v1130 = vpop.permute.xlu0 %1129
        %v1132 = vsel %vm461, %v1130, 0
        %1134 = vmatprep.subr.bf16.mxu0 0
        %1135 = vmatpush1.bf16.msra.mxu0 %v700
        %1136 = vmatprep.subr.bf16.mxu0 0
        %1137 = vmatpush1.bf16.msra.mxu0 %v701
        %1138 = vmatprep.subr.bf16.mxu0 0
        %1139 = vmatpush1.bf16.msra.mxu0 0
        %1140 = vmatprep.subr.bf16.mxu0 0
        %1141 = vmatpush1.bf16.msra.mxu0 0
        %1142 = vmatprep.subr.bf16.mxu0 0
        %1143 = vmatpush1.bf16.msra.mxu0 0
        %1144 = vmatprep.subr.bf16.mxu0 0
        %1145 = vmatpush1.bf16.msra.mxu0 0
        %1146 = vmatprep.subr.bf16.mxu0 0
        %1147 = vmatpush1.bf16.msra.mxu0 0
        %1148 = vmatprep.subr.bf16.mxu0 0
        %1149 = vmatpush1.bf16.msra.mxu0 0
        %1150 = vmatprep.subr.bf16.mxu0 0
        %1151 = vmatpush1.bf16.msra.mxu0 0
        %1152 = vmatprep.subr.bf16.mxu0 0
        %1153 = vmatpush1.bf16.msra.mxu0 0
        %1154 = vmatprep.subr.bf16.mxu0 0
        %1155 = vmatpush1.bf16.msra.mxu0 0
        %1156 = vmatprep.subr.bf16.mxu0 0
        %1157 = vmatpush1.bf16.msra.mxu0 0
        %1158 = vmatprep.subr.bf16.mxu0 0
        %1159 = vmatpush1.bf16.msra.mxu0 0
        %1160 = vmatprep.subr.bf16.mxu0 0
        %1161 = vmatpush1.bf16.msra.mxu0 0
        %1162 = vmatprep.subr.bf16.mxu0 0
        %1163 = vmatpush1.bf16.msra.mxu0 0
        %1164 = vmatprep.subr.bf16.mxu0 0
        %1165 = vmatpush1.bf16.msra.mxu0 0
        %1166 = vmatprep.mubr.bf16.mxu0 0
        %1167 = vmatmul.mubr.bf16.gmra.mrb[0].mxu0 %v1132
        %v1168 = vpop.f32.mrb[0].mxu0
        %v1169 = vadd.f32 %v1123, %v1168
        %v1170 = vpop.f32.mrb[0].mxu0
        %v1171 = vpop.f32.mrb[0].mxu0
        %v1172 = vpop.f32.mrb[0].mxu0
        %1173 = vdwg.mxu0
        %v1174 = vadd.f32 %v1169, %v751
        %v1175 = vxor.u32 %v1174, 2147483648
        %v1176 = vmul.f32 %v1175, 1.442695
        %v1177 = vpow.pop %v1176
        %v1178 = vadd.f32 %v1177, 1.0
        %v1179 = vrcp.pop %v1178
        %v1180 = vmul.f32 1.0, %v1179
        %v1181 = vmul.f32 %v1180, 2.0
        %v1182 = vsub.f32 %v1181, 1.0
        %v1183 = vmul.f32 %v1180, %v986
        %1185 = vrot.lane.b32.xlu0 %v1182, 64
        %v1186 = vpop.permute.xlu0 %1185
        %v1188 = vmul.f32 %v1180, %v1186
        %1190 = vrot.lane.b32.xlu0 %v1188, 32
        %v1191 = vpop.permute.xlu0 %1190
        %v1193 = vadd.f32 %v1183, %v1191
        %v1194 = vtanh.pop %v1193
        %1196 = vrot.lane.b32.xlu0 %v1194, 64
        %v1197 = vpop.permute.xlu0 %1196
        %v1199 = vmul.f32 %v1180, %v1197
        %s1200 = sadd.s32 %s410, 2
        %v1201 = vstv %s1200
        %vm1202 = vcmp.lt.s32.totalorder %v1201, %v534
        %v1203 = vsel %vm1202, 1, 0
        %1204 = vset.pattern.permute.xlu0 0
        %1205 = vperm.xlu0 %1204, %v1203
        %v1206 = vpop.permute.xlu0 %1205
        %vm1207 = vcmp.eq.s32.totalorder %v1206, 1
        %v1208 = vsel %vm1207, %v1193, %v1001
        %1210 = vrot.lane.b32.xlu0 %v1193, 96
        %v1211 = vpop.permute.xlu0 %1210
        %v1213 = vmax.f32 %v1007, %v1211
        %v1214 = vsel %vm1207, %v1213, %v1007
        %v1215 = vmin.f32 %v1009, %v1211
        %v1216 = vsel %vm1207, %v1215, %v1009
        %v1217 = vadd.f32 %v1011, %v1211
        %v1218 = vsel %vm1207, %v1217, %v1011
        %s1219 = scalar_lea.vmem [#allocation2], 24
        %v1220 = vld [vmem:[%s1219] sm:$0xff]
        %1221 = vmatprep.subr.bf16.mxu0 0
        %1222 = vmatpush1.bf16.msra.mxu0 %v555
        %1223 = vmatprep.subr.bf16.mxu0 0
        %1224 = vmatpush1.bf16.msra.mxu0 %v556
        %1225 = vmatprep.subr.bf16.mxu0 0
        %1226 = vmatpush1.bf16.msra.mxu0 0
        %1227 = vmatprep.subr.bf16.mxu0 0
        %1228 = vmatpush1.bf16.msra.mxu0 0
        %1229 = vmatprep.subr.bf16.mxu0 0
        %1230 = vmatpush1.bf16.msra.mxu0 0
        %1231 = vmatprep.subr.bf16.mxu0 0
        %1232 = vmatpush1.bf16.msra.mxu0 0
        %1233 = vmatprep.subr.bf16.mxu0 0
        %1234 = vmatpush1.bf16.msra.mxu0 0
        %1235 = vmatprep.subr.bf16.mxu0 0
        %1236 = vmatpush1.bf16.msra.mxu0 0
        %1237 = vmatprep.subr.bf16.mxu0 0
        %1238 = vmatpush1.bf16.msra.mxu0 0
        %1239 = vmatprep.subr.bf16.mxu0 0
        %1240 = vmatpush1.bf16.msra.mxu0 0
        %1241 = vmatprep.subr.bf16.mxu0 0
        %1242 = vmatpush1.bf16.msra.mxu0 0
        %1243 = vmatprep.subr.bf16.mxu0 0
        %1244 = vmatpush1.bf16.msra.mxu0 0
        %1245 = vmatprep.subr.bf16.mxu0 0
        %1246 = vmatpush1.bf16.msra.mxu0 0
        %1247 = vmatprep.subr.bf16.mxu0 0
        %1248 = vmatpush1.bf16.msra.mxu0 0
        %1249 = vmatprep.subr.bf16.mxu0 0
        %1250 = vmatpush1.bf16.msra.mxu0 0
        %1251 = vmatprep.subr.bf16.mxu0 0
        %1252 = vmatpush1.bf16.msra.mxu0 0
        %1253 = vmatprep.mubr.bf16.mxu0 0
        %1254 = vmatmul.mubr.bf16.gmra.mrb[0].mxu0 %v1132
        %v1255 = vpop.f32.mrb[0].mxu0
        %v1256 = vadd.f32 0.0, %v1255
        %v1257 = vpop.f32.mrb[0].mxu0
        %v1258 = vpop.f32.mrb[0].mxu0
        %v1259 = vpop.f32.mrb[0].mxu0
        %1260 = vdwg.mxu0
        %v1261 = vadd.f32 %v1220, %v1256
        %v1262 = vxor.u32 %v1261, 2147483648
        %v1263 = vmul.f32 %v1262, 1.442695
        %v1264 = vpow.pop %v1263
        %v1265 = vadd.f32 %v1264, 1.0
        %v1266 = vrcp.pop %v1265
        %v1267 = vmul.f32 1.0, %v1266
        %v1268 = vmul.f32 %v1267, 2.0
        %v1269 = vsub.f32 %v1268, 1.0
        %v1270 = vmul.f32 %v1267, %v1073
        %1272 = vrot.lane.b32.xlu0 %v1269, 64
        %v1273 = vpop.permute.xlu0 %1272
        %v1275 = vmul.f32 %v1267, %v1273
        %1277 = vrot.lane.b32.xlu0 %v1275, 32
        %v1278 = vpop.permute.xlu0 %1277
        %v1280 = vadd.f32 %v1270, %v1278
        %v1281 = vtanh.pop %v1280
        %1283 = vrot.lane.b32.xlu0 %v1281, 64
        %v1284 = vpop.permute.xlu0 %1283
        %v1286 = vmul.f32 %v1267, %v1284
        %v1287 = vpack.c.bf16 %v1286, %v1286
        %v1288 = vpack.c.bf16 %v1199, %v1199
        %1290 = vrot.lane.b32.xlu0 %v1288, 32
        %v1291 = vpop.permute.xlu0 %1290
        %v1293 = vsel %vm461, %v1291, 0
        %1295 = vmatprep.subr.bf16.mxu0 0
        %1296 = vmatpush1.bf16.msra.mxu0 %v642
        %1297 = vmatprep.subr.bf16.mxu0 0
        %1298 = vmatpush1.bf16.msra.mxu0 %v643
        %1299 = vmatprep.subr.bf16.mxu0 0
        %1300 = vmatpush1.bf16.msra.mxu0 0
        %1301 = vmatprep.subr.bf16.mxu0 0
        %1302 = vmatpush1.bf16.msra.mxu0 0
        %1303 = vmatprep.subr.bf16.mxu0 0
        %1304 = vmatpush1.bf16.msra.mxu0 0
        %1305 = vmatprep.subr.bf16.mxu0 0
        %1306 = vmatpush1.bf16.msra.mxu0 0
        %1307 = vmatprep.subr.bf16.mxu0 0
        %1308 = vmatpush1.bf16.msra.mxu0 0
        %1309 = vmatprep.subr.bf16.mxu0 0
        %1310 = vmatpush1.bf16.msra.mxu0 0
        %1311 = vmatprep.subr.bf16.mxu0 0
        %1312 = vmatpush1.bf16.msra.mxu0 0
        %1313 = vmatprep.subr.bf16.mxu0 0
        %1314 = vmatpush1.bf16.msra.mxu0 0
        %1315 = vmatprep.subr.bf16.mxu0 0
        %1316 = vmatpush1.bf16.msra.mxu0 0
        %1317 = vmatprep.subr.bf16.mxu0 0
        %1318 = vmatpush1.bf16.msra.mxu0 0
        %1319 = vmatprep.subr.bf16.mxu0 0
        %1320 = vmatpush1.bf16.msra.mxu0 0
        %1321 = vmatprep.subr.bf16.mxu0 0
        %1322 = vmatpush1.bf16.msra.mxu0 0
        %1323 = vmatprep.subr.bf16.mxu0 0
        %1324 = vmatpush1.bf16.msra.mxu0 0
        %1325 = vmatprep.subr.bf16.mxu0 0
        %1326 = vmatpush1.bf16.msra.mxu0 0
        %1327 = vmatprep.mubr.bf16.mxu0 0
        %1328 = vmatmul.mubr.bf16.gmra.mrb[0].mxu0 %v1293
        %v1329 = vpop.f32.mrb[0].mxu0
        %v1330 = vadd.f32 0.0, %v1329
        %v1331 = vpop.f32.mrb[0].mxu0
        %v1332 = vpop.f32.mrb[0].mxu0
        %v1333 = vpop.f32.mrb[0].mxu0
        %1334 = vdwg.mxu0
        %1336 = vrot.lane.b32.xlu0 %v1287, 32
        %v1337 = vpop.permute.xlu0 %1336
        %v1339 = vsel %vm461, %v1337, 0
        %1341 = vmatprep.subr.bf16.mxu0 0
        %1342 = vmatpush1.bf16.msra.mxu0 %v700
        %1343 = vmatprep.subr.bf16.mxu0 0
        %1344 = vmatpush1.bf16.msra.mxu0 %v701
        %1345 = vmatprep.subr.bf16.mxu0 0
        %1346 = vmatpush1.bf16.msra.mxu0 0
        %1347 = vmatprep.subr.bf16.mxu0 0
        %1348 = vmatpush1.bf16.msra.mxu0 0
        %1349 = vmatprep.subr.bf16.mxu0 0
        %1350 = vmatpush1.bf16.msra.mxu0 0
        %1351 = vmatprep.subr.bf16.mxu0 0
        %1352 = vmatpush1.bf16.msra.mxu0 0
        %1353 = vmatprep.subr.bf16.mxu0 0
        %1354 = vmatpush1.bf16.msra.mxu0 0
        %1355 = vmatprep.subr.bf16.mxu0 0
        %1356 = vmatpush1.bf16.msra.mxu0 0
        %1357 = vmatprep.subr.bf16.mxu0 0
        %1358 = vmatpush1.bf16.msra.mxu0 0
        %1359 = vmatprep.subr.bf16.mxu0 0
        %1360 = vmatpush1.bf16.msra.mxu0 0
        %1361 = vmatprep.subr.bf16.mxu0 0
        %1362 = vmatpush1.bf16.msra.mxu0 0
        %1363 = vmatprep.subr.bf16.mxu0 0
        %1364 = vmatpush1.bf16.msra.mxu0 0
        %1365 = vmatprep.subr.bf16.mxu0 0
        %1366 = vmatpush1.bf16.msra.mxu0 0
        %1367 = vmatprep.subr.bf16.mxu0 0
        %1368 = vmatpush1.bf16.msra.mxu0 0
        %1369 = vmatprep.subr.bf16.mxu0 0
        %1370 = vmatpush1.bf16.msra.mxu0 0
        %1371 = vmatprep.subr.bf16.mxu0 0
        %1372 = vmatpush1.bf16.msra.mxu0 0
        %1373 = vmatprep.mubr.bf16.mxu0 0
        %1374 = vmatmul.mubr.bf16.gmra.mrb[0].mxu0 %v1339
        %v1375 = vpop.f32.mrb[0].mxu0
        %v1376 = vadd.f32 %v1330, %v1375
        %v1377 = vpop.f32.mrb[0].mxu0
        %v1378 = vpop.f32.mrb[0].mxu0
        %v1379 = vpop.f32.mrb[0].mxu0
        %1380 = vdwg.mxu0
        %v1381 = vadd.f32 %v1376, %v751
        %v1382 = vxor.u32 %v1381, 2147483648
        %v1383 = vmul.f32 %v1382, 1.442695
        %v1384 = vpow.pop %v1383
        %v1385 = vadd.f32 %v1384, 1.0
        %v1386 = vrcp.pop %v1385
        %v1387 = vmul.f32 1.0, %v1386
        %v1388 = vmul.f32 %v1387, 2.0
        %v1389 = vsub.f32 %v1388, 1.0
        %v1390 = vmul.f32 %v1387, %v1193
        %1392 = vrot.lane.b32.xlu0 %v1389, 64
        %v1393 = vpop.permute.xlu0 %1392
        %v1395 = vmul.f32 %v1387, %v1393
        %1397 = vrot.lane.b32.xlu0 %v1395, 32
        %v1398 = vpop.permute.xlu0 %1397
        %v1400 = vadd.f32 %v1390, %v1398
        %v1401 = vtanh.pop %v1400
        %1403 = vrot.lane.b32.xlu0 %v1401, 64
        %v1404 = vpop.permute.xlu0 %1403
        %v1406 = vmul.f32 %v1387, %v1404
        %s1407 = sadd.s32 %s410, 3
        %v1408 = vstv %s1407
        %vm1409 = vcmp.lt.s32.totalorder %v1408, %v534
        %v1410 = vsel %vm1409, 1, 0
        %1411 = vset.pattern.permute.xlu0 0
        %1412 = vperm.xlu0 %1411, %v1410
        %v1413 = vpop.permute.xlu0 %1412
        %vm1414 = vcmp.eq.s32.totalorder %v1413, 1
        %v1415 = vsel %vm1414, %v1400, %v1208
        %1417 = vrot.lane.b32.xlu0 %v1400, 96
        %v1418 = vpop.permute.xlu0 %1417
        %v1420 = vmax.f32 %v1214, %v1418
        %v1421 = vsel %vm1414, %v1420, %v1214
        %v1422 = vmin.f32 %v1216, %v1418
        %v1423 = vsel %vm1414, %v1422, %v1216
        %v1424 = vadd.f32 %v1218, %v1418
        %v1425 = vsel %vm1414, %v1424, %v1218
        %1427 = vrot.lane.b32.xlu0 %v1286, 32
        %v1428 = vpop.permute.xlu0 %1427
        %1430 = vst.msk [vmem:[#allocation3] sm:$0xff] %vm461, %v1428
        %1432 = vrot.lane.b32.xlu0 %v1280, 96
        %v1433 = vpop.permute.xlu0 %1432
        %1435 = vst.msk [vmem:[#allocation4] sm:$0xff] %vm461, %v1433
        %1437 = vrot.lane.b32.xlu0 %v1406, 32
        %v1438 = vpop.permute.xlu0 %1437
        %1440 = vst.msk [vmem:[%s536] sm:$0xff] %vm461, %v1438
        %1441 = vst.msk [vmem:[%s539] sm:$0xff] %vm461, %v1418
        %1443 = vrot.lane.b32.xlu0 %v1415, 96
        %v1444 = vpop.permute.xlu0 %1443
        %1446 = vst.msk [vmem:[#allocation5] sm:$0xff] %vm461, %v1444
        %1447 = vst.msk [vmem:[#allocation6] sm:$0xff] %vm461, %v1421
        %1448 = vst.msk [vmem:[#allocation7] sm:$0xff] %vm461, %v1423
        %1449 = vst.msk [vmem:[#allocation8] sm:$0xff] %vm461, %v1425
        %p1450 = scmp.eq.s32.totalorder %s27, 1
        // Predicated region
        $region89: #{tpu_custom_call.1} parent=51 // pred_check
          %p1451 = pneg %p1450
        $region90: #{tpu_custom_call.1} parent=51 // pred_check_branch
          %1453 = sbr.rel (%p1451) target = $region92
        $region91: #{tpu_custom_call.1} parent=51 // pred_region
          %v1454 = vld [vmem:[#allocation8] sm:$0xff]
          %v1455 = vld [vmem:[#allocation21] sm:$0xff]
          %v1456 = vcvt.s32.f32 %v1455
          %1458 = vset.pattern.permute.xlu0 0
          %1459 = vperm.xlu0 %1458, %v1456
          %v1460 = vpop.permute.xlu0 %1459
          %v1462 = vrcp.pop %v1460
          %v1463 = vmul.f32 %v1454, %v1462
          %v1464 = vld [vmem:[#allocation5] sm:$0xff]
          %v1465 = vld [vmem:[#allocation6] sm:$0xff]
          %v1466 = vld [vmem:[#allocation7] sm:$0xff]
          %1468 = vrot.lane.b32.xlu0 %v1465, 32
          %v1469 = vpop.permute.xlu0 %1468
          %1472 = vrot.lane.b32.xlu0 %v1466, 64
          %v1473 = vpop.permute.xlu0 %1472
          %1476 = vrot.lane.b32.xlu0 %v1463, 96
          %v1477 = vpop.permute.xlu0 %1476
          %v1479 = vsel %vm461, %v1464, %v1469
          %vm1480 = vcmask 523264
          %v1481 = vsel %vm1480, %v1479, %v1473
          %vm1482 = vcmask 785408
          %v1483 = vsel %vm1482, %v1481, %v1477
          %1484 = vst [vmem:[#allocation23] sm:$0xff] %v1483
        $region92: #{tpu_custom_call.1} parent=51 // pred_fallthru
          _
        // Predicated region
        $region93: #{tpu_custom_call.1} parent=51 // pred_check
          %p1485 = pneg %p213
        $region94: #{tpu_custom_call.1} parent=51 // pred_check_branch
          %1487 = sbr.rel (%p1485) target = $region96
        $region95: #{tpu_custom_call.1} parent=51 // pred_region
          %s1489 = ssub.s32 128, 128
          %1490 = vsyncadd [#allocation11], %s1489
          %s1492 = sshll.u32 [#allocation23], 4
          %s1493 = int_to_ptr.vmem [resolvable:$true] %s1492
          %1495 = dma.vmem_to_hbm [thread:$0]  %s1493, 128, %s8, [#allocation11]
        $region96: #{tpu_custom_call.1} parent=51 // pred_fallthru
          _
        // Predicated region
        $region97: #{tpu_custom_call.1} parent=51 // pred_check
          %p1496 = pneg %p213
        $region98: #{tpu_custom_call.1} parent=51 // pred_check_branch
          %1498 = sbr.rel (%p1496) target = $region100
        $region99: #{tpu_custom_call.1} parent=51 // pred_region
          %1499 = dma.done [#allocation11], 128
        $region100: #{tpu_custom_call.1} parent=51 // pred_fallthru
          _
      $region52: #{tpu_custom_call.1} parent=5 // pred_fallthru
        _
      %p1500 = scmp.le.s32.totalorder 2, %s22
      // Predicated region
      $region101: #{tpu_custom_call.1} parent=5 // pred_check
        %p1501 = pneg %p1500
      $region102: #{tpu_custom_call.1} parent=5 // pred_check_branch
        %1503 = sbr.rel (%p1501) target = $region104
      $region103: #{tpu_custom_call.1} parent=5 // pred_region
        %s1504 = ssub.s32 %s22, 2
      $region104: #{tpu_custom_call.1} parent=5 // pred_fallthru
        _
    $region6: #{tpu_custom_call.1} parent=1 // loop_footer
      %s26 = sadd.s32 1, %s22
    $region7: #{tpu_custom_call.1} parent=1 // loop_footer_branch
      %21 = sbr.rel target = $region3
    $region8: #{tpu_custom_call.1} parent=1 // loop_exit
      _
    %1505 = vsyncpa [#allocation10], 1
    %s1506 = scalar_lea.sflag [#allocation10], 1
    %1507 = vsyncpa %s1506, 1
    %1508 = vsyncpa [#allocation13], 1
    %1509 = vsyncpa [#allocation16], 1
    %1510 = vsyncpa [#allocation19], 1
    %1511 = vsyncpa [#allocation22], 1
    %1512 = vsyncpa [#allocation11], 1
    %s1513 = scalar_lea.sflag [#allocation11], 1
    %1514 = vsyncpa %s1513, 1

</llo_original>
